<compile_context>
chip_gen: v5e
topology: v5e:2x2
jax: 0.10.0
libtpu: 0.0.40
codegen_flags: <defaults>
</compile_context>

<pallas_src>
import jax
import jax.numpy as jnp
from jax.experimental import pallas as pl
from jax.experimental.pallas import tpu as pltpu

NEG_SLOPE = 0.2   # LeakyReLU(0.2) used throughout the Predictor blocks
LANES = 128       # lane width of the packed weight / bias slabs


def _leaky_relu(x):
    return jnp.where(x >= 0, x, NEG_SLOPE * x)


# ----------------------------------------------------------------------------
# Parameter construction (deterministic, synthetic)
# ----------------------------------------------------------------------------
def init_predictor(key, in_dim, mid_dim, out_dim, num_layers=2, final_act=None):
    dims = [(in_dim, mid_dim)] + [(mid_dim, mid_dim)] * num_layers + [(mid_dim, out_dim)]
    acts = ["leaky_relu"] * (num_layers + 1) + [final_act]
    keys = jax.random.split(key, len(dims))
    layers = []
    for k, (di, do), act in zip(keys, dims, acts):
        kw, kb = jax.random.split(k)
        w = jax.random.normal(kw, (di, do), jnp.float32) * (1.0 / jnp.sqrt(di))
        b = jax.random.normal(kb, (1, do), jnp.float32) * 0.01
        layers.append((w, b, act))
    return layers


def init_lstm(key, hidden):
    kih, khh, kbi, kbh = jax.random.split(key, 4)
    scale = 1.0 / jnp.sqrt(hidden)
    wih = jax.random.uniform(kih, (hidden, 4 * hidden), jnp.float32, -scale, scale)
    whh = jax.random.uniform(khh, (hidden, 4 * hidden), jnp.float32, -scale, scale)
    b_ih = jax.random.uniform(kbi, (1, 4 * hidden), jnp.float32, -scale, scale)
    b_hh = jax.random.uniform(kbh, (1, 4 * hidden), jnp.float32, -scale, scale)
    return {"wih": wih, "whh": whh, "b": b_ih + b_hh}


def init_params(key, hp):
    ks = jax.random.split(key, 5)
    action_dim = hp["action_dim"] * 2 if hp["gaussian_actions"] else hp["action_dim"]
    out_dim = action_dim + hp["n_classes"]
    params = {}
    if hp["goal_conditioned"]:
        params["embed_state"] = init_predictor(ks[0], hp["state_dim"], hp["embed_mid_size"],
                                               hp["embed_mid_size"], num_layers=2, final_act=None)
        params["embed_goal"] = init_predictor(ks[1], hp["goal_dim"], hp["embed_mid_size"],
                                              hp["embed_mid_size"], num_layers=2, final_act=None)
        embed_in = hp["embed_mid_size"] * 2
    else:
        embed_in = hp["state_dim"]
    params["embed"] = init_predictor(ks[2], embed_in, hp["embed_mid_size"],
                                     hp["lstm_hidden_size"], num_layers=2, final_act="leaky_relu")
    params["lstm"] = init_lstm(ks[3], hp["lstm_hidden_size"])
    params["output"] = init_predictor(ks[4], hp["lstm_hidden_size"], hp["output_mid_size"],
                                      out_dim, num_layers=hp["n_processing_layers"],
                                      final_act=None)
    return params


# ----------------------------------------------------------------------------
# Fused forward-pass builder
# ----------------------------------------------------------------------------
def build_forward(params, hp, batch_size, seq_len):
    B, T = batch_size, seq_len
    S, G = hp["state_dim"], hp["goal_dim"]
    H = hp["lstm_hidden_size"]
    MID = hp["embed_mid_size"]
    goal_conditioned = hp["goal_conditioned"]
    autoreg = hp["autoreg"]
    action_dim = hp["action_dim"] * 2 if hp["gaussian_actions"] else hp["action_dim"]
    out_dim = action_dim + hp["n_classes"]

    # ---- host-side packing of every weight / bias into two lane-dense slabs ------
    weight_blocks, bias_rows = [], []
    row_off = 0

    def reg_weight(w):
        nonlocal row_off
        w = jnp.asarray(w, jnp.float32)
        din, dout = w.shape
        assert dout <= LANES, dout
        pad = (-din) % 8                      # keep every block 8-sublane aligned
        weight_blocks.append(jnp.pad(w, ((0, pad), (0, LANES - dout))))
        off = row_off
        row_off += din + pad
        return off

    def reg_bias(b):
        b = jnp.asarray(b, jnp.float32).reshape(1, -1)
        assert b.shape[1] <= LANES
        bias_rows.append(jnp.pad(b, ((0, 0), (0, LANES - b.shape[1]))))
        return len(bias_rows) - 1

    def reg_mlp(layers):
        return [dict(woff=reg_weight(w), brow=reg_bias(b),
                     din=w.shape[0], dout=w.shape[1], act=act)
                for w, b, act in layers]

    descs = {}
    if goal_conditioned:
        descs["embed_state"] = reg_mlp(params["embed_state"])
        descs["embed_goal"] = reg_mlp(params["embed_goal"])
    descs["embed"] = reg_mlp(params["embed"])
    lstm_wih_off = reg_weight(params["lstm"]["wih"])
    lstm_whh_off = reg_weight(params["lstm"]["whh"])
    lstm_b_row = reg_bias(params["lstm"]["b"])
    descs["output"] = reg_mlp(params["output"])

    w_slab = jnp.concatenate(weight_blocks, axis=0)        # [R, 128] f32
    b_slab = jnp.concatenate(bias_rows, axis=0)            # [NB, 128] f32
    R, NB = int(w_slab.shape[0]), int(b_slab.shape[0])

    # ---- the fused kernel ----------------------------------------------------------
    def kernel(state_ref, goal_ref, w_ref, b_ref, o_ref, h_buf):
        def load_w(off, din, dout):
            w = w_ref[pl.ds(off, din), :]                  # static row window in slab
            return w[:, :dout] if dout < LANES else w

        def load_b(row, dout):
            b = b_ref[pl.ds(row, 1), :]
            return b[:, :dout] if dout < LANES else b

        def dense(x, d):
            y = jnp.dot(x, load_w(d["woff"], d["din"], d["dout"]),
                        preferred_element_type=jnp.float32) + load_b(d["brow"], d["dout"])
            return _leaky_relu(y) if d["act"] == "leaky_relu" else y

        def mlp(x, layer_descs):
            for d in layer_descs:
                x = dense(x, d)
            return x

        # Inputs stay batch-major: flat row b*T + t == the module's .view(-1, D) order.
        x3 = state_ref[...]                                # [B, T, S]
        if autoreg:
            x3 = jnp.broadcast_to(x3[:, 0:1, :], (B, T, S))
        x_rows = x3.reshape(B * T, S)

        if goal_conditioned:
            st = mlp(x_rows, descs["embed_state"])                    # [B*T, MID]
            gl = mlp(goal_ref[...][:, 0, :], descs["embed_goal"])     # [B, MID] (goal const in t)
            # First embed layer, algebraically de-concatenated:
            #   leaky(cat(st, gl_rep) @ W0 + b0) == leaky(st @ W_top + (gl @ W_bot + b0))
            d0 = descs["embed"][0]
            w_top = load_w(d0["woff"], MID, d0["dout"])
            w_bot = load_w(d0["woff"] + MID, MID, d0["dout"])
            gbias = jnp.dot(gl, w_bot, preferred_element_type=jnp.float32) \
                    + load_b(d0["brow"], d0["dout"])                  # [B, dout], computed once
            z = jnp.dot(st, w_top, preferred_element_type=jnp.float32)
            z = z.reshape(B, T, d0["dout"]) + gbias[:, None, :]       # broadcast over T
            emb = mlp(_leaky_relu(z).reshape(B * T, d0["dout"]), descs["embed"][1:])
        else:
            emb = mlp(x_rows, descs["embed"])              # [B*T, H]

        # ---- LSTM: one batched input projection + unrolled recurrence over static T
        wih = load_w(lstm_wih_off, H, 4 * H)               # [H, 4H] (i,f,g,o)
        whh = load_w(lstm_whh_off, H, 4 * H)
        b_l = load_b(lstm_b_row, 4 * H)
        xg = (jnp.dot(emb, wih, preferred_element_type=jnp.float32) + b_l
              ).reshape(B, T, 4 * H)

        # TODO(synk): pltpu.matmul_push_rhs/acc_lhs/pop could keep Whh MXU-resident
        # across the serial steps; jnp.dot kept for portability (MRF vs MRB chips).
        h = jnp.zeros((B, H), jnp.float32)
        c = jnp.zeros((B, H), jnp.float32)
        for t in range(T):                                 # static T -> fully unrolled
            gates = xg[:, t, :] + jnp.dot(h, whh, preferred_element_type=jnp.float32)
            sg = jax.nn.sigmoid(gates)                     # ONE EUP pass covers i/f/o
            g = jnp.tanh(gates[:, 2 * H:3 * H])            # + one tanh for g
            c = sg[:, H:2 * H] * c + sg[:, 0:H] * g
            h = sg[:, 3 * H:4 * H] * jnp.tanh(c)
            h_buf[:, t, :] = h                             # store overlaps next h@Whh

        lstm_out = h_buf[...].reshape(B * T, H)            # batch-major rows
        y = mlp(lstm_out, descs["output"])                 # [B*T, out_dim]
        o_ref[...] = y.astype(o_ref.dtype)

    # ---- pallas_call plumbing --------------------------------------------------------
    def full_spec(shape):
        return pl.BlockSpec(shape, lambda i, _r=len(shape): (0,) * _r)

    fused = pl.pallas_call(
        kernel,
        out_shape=jax.ShapeDtypeStruct((B * T, out_dim), jnp.float32),
        grid=(1,),
        in_specs=[full_spec((B, T, S)), full_spec((B, T, G)),
                  full_spec((R, LANES)), full_spec((NB, LANES))],
        out_specs=full_spec((B * T, out_dim)),
        scratch_shapes=[pltpu.VMEM((B, T, H), jnp.float32)],
        compiler_params=pltpu.CompilerParams(
            # single sequential step: tiny workload; on v7x add a leading "parallel"
            # batch-group grid axis only if many independent sequences exist.
            dimension_semantics=("arbitrary",),
            # real footprint < 1 MiB; 4 MiB documents the budget (v7x VMEM = 64 MiB)
            vmem_limit_bytes=4 * 1024 * 1024,
        ),
    )

    def forward(states, goals):
        assert states.shape == (B, T, S) and goals.shape == (B, T, G)
        # No wrapper-side transpose/reshape/slice: the kernel consumes the module's
        # native [B, T, D] layout and writes the final [B*T, out_dim] rows directly.
        return fused(states, goals, w_slab, b_slab)

    return forward


# ----------------------------------------------------------------------------
# Pure-JAX reference (mirrors RecurrentPolicy.forward) for a correctness check
# ----------------------------------------------------------------------------
def reference_forward(params, hp, states, goals):
    B, T = states.shape[:2]
    if hp["autoreg"]:
        states = jnp.broadcast_to(states[:, 0:1, :], states.shape)

    def mlp(x, layers):
        for w, b, act in layers:
            x = x @ w + b
            if act == "leaky_relu":
                x = jnp.where(x >= 0, x, NEG_SLOPE * x)
        return x

    if hp["goal_conditioned"]:
        goal_states = jnp.broadcast_to(goals[:, 0:1, :], (B, T, goals.shape[-1]))
        st = mlp(states.reshape(-1, hp["state_dim"]), params["embed_state"])
        gl = mlp(goal_states.reshape(-1, hp["goal_dim"]), params["embed_goal"])
        embed = jnp.concatenate([st, gl], axis=-1)
    else:
        embed = states.reshape(-1, hp["state_dim"])
    embed = mlp(embed, params["embed"])

    H = hp["lstm_hidden_size"]
    wih, whh, b = params["lstm"]["wih"], params["lstm"]["whh"], params["lstm"]["b"]

    def step(carry, x_t):
        h, c = carry
        gates = x_t @ wih + h @ whh + b
        i = jax.nn.sigmoid(gates[:, :H])
        f = jax.nn.sigmoid(gates[:, H:2 * H])
        g = jnp.tanh(gates[:, 2 * H:3 * H])
        o = jax.nn.sigmoid(gates[:, 3 * H:])
        c = f * c + i * g
        h = o * jnp.tanh(c)
        return (h, c), h

    x_tbh = jnp.transpose(embed.reshape(B, T, H), (1, 0, 2))
    _, hs = jax.lax.scan(step, (jnp.zeros((B, H)), jnp.zeros((B, H))), x_tbh)
    lstm_out = jnp.transpose(hs, (1, 0, 2)).reshape(B * T, H)
    return mlp(lstm_out, params["output"])


# ----------------------------------------------------------------------------
if __name__ == "__main__":
    hp = dict(
        state_dim=10,
        goal_dim=10,
        embed_mid_size=32,
        lstm_hidden_size=32,
        output_mid_size=32,
        action_dim=4,
        n_classes=3,
        n_processing_layers=2,
        goal_conditioned=True,
        autoreg=False,
        gaussian_actions=False,
    )
    B, T = 2, 8

    key = jax.random.PRNGKey(0)
    kp, ks, kg = jax.random.split(key, 3)
    params = init_params(kp, hp)
    states = jax.random.normal(ks, (B, T, hp["state_dim"]), jnp.float32)
    goals = jax.random.normal(kg, (B, T, hp["goal_dim"]), jnp.float32)

    fwd = jax.jit(build_forward(params, hp, B, T))
    actions = fwd(states, goals)
    jax.block_until_ready(actions)

    expected_shape = (B * T, hp["action_dim"] + hp["n_classes"])
    assert actions.shape == expected_shape, (actions.shape, expected_shape)
    assert bool(jnp.all(jnp.isfinite(actions)))

    ref = reference_forward(params, hp, states, goals)
    # Tightened from 5e-2 -> 2e-2; not 1e-5 because the XLA reference and the Mosaic
    # kernel may use different default f32 MXU pass counts (pinning both to
    # Precision.HIGHEST would allow ~1e-5 but risks unsupported lowering paths).
    max_err = float(jnp.max(jnp.abs(actions - ref)))
    assert bool(jnp.allclose(actions, ref, rtol=2e-2, atol=2e-2)), max_err

    print("KERNEL_OK")
</pallas_src>

<mosaic_0001>
module attributes {stable_mosaic.version = 11 : i64} {
  func.func @kernel(%arg0: i32, %arg1: memref<2x8x10xf32, #tpu.memory_space<vmem>>, %arg2: memref<2x8x10xf32, #tpu.memory_space<vmem>>, %arg3: memref<576x128xf32, #tpu.memory_space<vmem>>, %arg4: memref<17x128xf32, #tpu.memory_space<vmem>>, %arg5: memref<16x7xf32, #tpu.memory_space<vmem>>, %arg6: memref<2x8x32xf32, #tpu.memory_space<vmem>>) attributes {dimension_semantics = [#tpu.dimension_semantics<arbitrary>], iteration_bounds = array<i64: 1>, scalar_prefetch = 0 : i64, scratch_operands = 1 : i64, tpu.core_type = #tpu.core_type<tc>, window_params = [{pipeline_mode = #tpu.pipeline_mode<synchronous>, transform_indices = @transform_0, window_bounds = array<i64: 2, 8, 10>}, {pipeline_mode = #tpu.pipeline_mode<synchronous>, transform_indices = @transform_1, window_bounds = array<i64: 2, 8, 10>}, {pipeline_mode = #tpu.pipeline_mode<synchronous>, transform_indices = @transform_2, window_bounds = array<i64: 576, 128>}, {pipeline_mode = #tpu.pipeline_mode<synchronous>, transform_indices = @transform_3, window_bounds = array<i64: 17, 128>}, {pipeline_mode = #tpu.pipeline_mode<synchronous>, transform_indices = @transform_4, window_bounds = array<i64: 16, 7>}]} {
    %c0 = arith.constant 0 : index
    %c0_0 = arith.constant 0 : index
    %c0_1 = arith.constant 0 : index
    %0 = vector.load %arg1[%c0, %c0_0, %c0_1] : memref<2x8x10xf32, #tpu.memory_space<vmem>>, vector<2x8x10xf32>
    %1 = vector.shape_cast %0 : vector<2x8x10xf32> to vector<16x10xf32>
    %c0_2 = arith.constant 0 : index
    %c0_3 = arith.constant 0 : index
    %2 = vector.load %arg3[%c0_2, %c0_3] : memref<576x128xf32, #tpu.memory_space<vmem>>, vector<10x128xf32>
    %3 = vector.extract_strided_slice %2 {offsets = [0, 0], sizes = [10, 32], strides = [1, 1]} : vector<10x128xf32> to vector<10x32xf32>
    %cst = arith.constant dense<0.000000e+00> : vector<16x32xf32>
    %4 = tpu.matmul %1, %3, %cst {dimension_numbers = #tpu.dot_dimension_numbers<[1], [0], [0], [1], [0, 0, 1, 1], [], []>} : vector<16x10xf32>, vector<10x32xf32>, vector<16x32xf32> -> vector<16x32xf32>
    %c0_4 = arith.constant 0 : index
    %c0_5 = arith.constant 0 : index
    %5 = vector.load %arg4[%c0_4, %c0_5] : memref<17x128xf32, #tpu.memory_space<vmem>>, vector<1x128xf32>
    %6 = vector.extract_strided_slice %5 {offsets = [0, 0], sizes = [1, 32], strides = [1, 1]} : vector<1x128xf32> to vector<1x32xf32>
    %7 = vector.broadcast %6 : vector<1x32xf32> to vector<16x32xf32>
    %8 = arith.addf %4, %7 : vector<16x32xf32>
    %cst_6 = arith.constant 0.000000e+00 : f32
    %9 = vector.broadcast %cst_6 : f32 to vector<16x32xf32>
    %10 = arith.cmpf oge, %8, %9 : vector<16x32xf32>
    %cst_7 = arith.constant 2.000000e-01 : f32
    %11 = vector.broadcast %cst_7 : f32 to vector<16x32xf32>
    %12 = arith.mulf %11, %8 : vector<16x32xf32>
    %13 = arith.select %10, %8, %12 : vector<16x32xi1>, vector<16x32xf32>
    %c16 = arith.constant 16 : index
    %c0_8 = arith.constant 0 : index
    %14 = vector.load %arg3[%c16, %c0_8] : memref<576x128xf32, #tpu.memory_space<vmem>>, vector<32x128xf32>
    %15 = vector.extract_strided_slice %14 {offsets = [0, 0], sizes = [32, 32], strides = [1, 1]} : vector<32x128xf32> to vector<32x32xf32>
    %cst_9 = arith.constant dense<0.000000e+00> : vector<16x32xf32>
    %16 = tpu.matmul %13, %15, %cst_9 {dimension_numbers = #tpu.dot_dimension_numbers<[1], [0], [0], [1], [0, 0, 1, 1], [], []>} : vector<16x32xf32>, vector<32x32xf32>, vector<16x32xf32> -> vector<16x32xf32>
    %c1 = arith.constant 1 : index
    %c0_10 = arith.constant 0 : index
    %17 = vector.load %arg4[%c1, %c0_10] : memref<17x128xf32, #tpu.memory_space<vmem>>, vector<1x128xf32>
    %18 = vector.extract_strided_slice %17 {offsets = [0, 0], sizes = [1, 32], strides = [1, 1]} : vector<1x128xf32> to vector<1x32xf32>
    %19 = vector.broadcast %18 : vector<1x32xf32> to vector<16x32xf32>
    %20 = arith.addf %16, %19 : vector<16x32xf32>
    %cst_11 = arith.constant 0.000000e+00 : f32
    %21 = vector.broadcast %cst_11 : f32 to vector<16x32xf32>
    %22 = arith.cmpf oge, %20, %21 : vector<16x32xf32>
    %cst_12 = arith.constant 2.000000e-01 : f32
    %23 = vector.broadcast %cst_12 : f32 to vector<16x32xf32>
    %24 = arith.mulf %23, %20 : vector<16x32xf32>
    %25 = arith.select %22, %20, %24 : vector<16x32xi1>, vector<16x32xf32>
    %c48 = arith.constant 48 : index
    %c0_13 = arith.constant 0 : index
    %26 = vector.load %arg3[%c48, %c0_13] : memref<576x128xf32, #tpu.memory_space<vmem>>, vector<32x128xf32>
    %27 = vector.extract_strided_slice %26 {offsets = [0, 0], sizes = [32, 32], strides = [1, 1]} : vector<32x128xf32> to vector<32x32xf32>
    %cst_14 = arith.constant dense<0.000000e+00> : vector<16x32xf32>
    %28 = tpu.matmul %25, %27, %cst_14 {dimension_numbers = #tpu.dot_dimension_numbers<[1], [0], [0], [1], [0, 0, 1, 1], [], []>} : vector<16x32xf32>, vector<32x32xf32>, vector<16x32xf32> -> vector<16x32xf32>
    %c2 = arith.constant 2 : index
    %c0_15 = arith.constant 0 : index
    %29 = vector.load %arg4[%c2, %c0_15] : memref<17x128xf32, #tpu.memory_space<vmem>>, vector<1x128xf32>
    %30 = vector.extract_strided_slice %29 {offsets = [0, 0], sizes = [1, 32], strides = [1, 1]} : vector<1x128xf32> to vector<1x32xf32>
    %31 = vector.broadcast %30 : vector<1x32xf32> to vector<16x32xf32>
    %32 = arith.addf %28, %31 : vector<16x32xf32>
    %cst_16 = arith.constant 0.000000e+00 : f32
    %33 = vector.broadcast %cst_16 : f32 to vector<16x32xf32>
    %34 = arith.cmpf oge, %32, %33 : vector<16x32xf32>
    %cst_17 = arith.constant 2.000000e-01 : f32
    %35 = vector.broadcast %cst_17 : f32 to vector<16x32xf32>
    %36 = arith.mulf %35, %32 : vector<16x32xf32>
    %37 = arith.select %34, %32, %36 : vector<16x32xi1>, vector<16x32xf32>
    %c80 = arith.constant 80 : index
    %c0_18 = arith.constant 0 : index
    %38 = vector.load %arg3[%c80, %c0_18] : memref<576x128xf32, #tpu.memory_space<vmem>>, vector<32x128xf32>
    %39 = vector.extract_strided_slice %38 {offsets = [0, 0], sizes = [32, 32], strides = [1, 1]} : vector<32x128xf32> to vector<32x32xf32>
    %cst_19 = arith.constant dense<0.000000e+00> : vector<16x32xf32>
    %40 = tpu.matmul %37, %39, %cst_19 {dimension_numbers = #tpu.dot_dimension_numbers<[1], [0], [0], [1], [0, 0, 1, 1], [], []>} : vector<16x32xf32>, vector<32x32xf32>, vector<16x32xf32> -> vector<16x32xf32>
    %c3 = arith.constant 3 : index
    %c0_20 = arith.constant 0 : index
    %41 = vector.load %arg4[%c3, %c0_20] : memref<17x128xf32, #tpu.memory_space<vmem>>, vector<1x128xf32>
    %42 = vector.extract_strided_slice %41 {offsets = [0, 0], sizes = [1, 32], strides = [1, 1]} : vector<1x128xf32> to vector<1x32xf32>
    %43 = vector.broadcast %42 : vector<1x32xf32> to vector<16x32xf32>
    %44 = arith.addf %40, %43 : vector<16x32xf32>
    %c0_21 = arith.constant 0 : index
    %c0_22 = arith.constant 0 : index
    %c0_23 = arith.constant 0 : index
    %45 = vector.load %arg2[%c0_21, %c0_22, %c0_23] : memref<2x8x10xf32, #tpu.memory_space<vmem>>, vector<2x8x10xf32>
    %46 = vector.extract_strided_slice %45 {offsets = [0, 0, 0], sizes = [2, 1, 10], strides = [1, 1, 1]} : vector<2x8x10xf32> to vector<2x1x10xf32>
    %47 = vector.shape_cast %46 : vector<2x1x10xf32> to vector<2x10xf32>
    %c112 = arith.constant 112 : index
    %c0_24 = arith.constant 0 : index
    %48 = vector.load %arg3[%c112, %c0_24] : memref<576x128xf32, #tpu.memory_space<vmem>>, vector<10x128xf32>
    %49 = vector.extract_strided_slice %48 {offsets = [0, 0], sizes = [10, 32], strides = [1, 1]} : vector<10x128xf32> to vector<10x32xf32>
    %cst_25 = arith.constant dense<0.000000e+00> : vector<2x32xf32>
    %50 = tpu.matmul %47, %49, %cst_25 {dimension_numbers = #tpu.dot_dimension_numbers<[1], [0], [0], [1], [0, 0, 1, 1], [], []>} : vector<2x10xf32>, vector<10x32xf32>, vector<2x32xf32> -> vector<2x32xf32>
    %c4 = arith.constant 4 : index
    %c0_26 = arith.constant 0 : index
    %51 = vector.load %arg4[%c4, %c0_26] : memref<17x128xf32, #tpu.memory_space<vmem>>, vector<1x128xf32>
    %52 = vector.extract_strided_slice %51 {offsets = [0, 0], sizes = [1, 32], strides = [1, 1]} : vector<1x128xf32> to vector<1x32xf32>
    %53 = vector.broadcast %52 : vector<1x32xf32> to vector<2x32xf32>
    %54 = arith.addf %50, %53 : vector<2x32xf32>
    %cst_27 = arith.constant 0.000000e+00 : f32
    %55 = vector.broadcast %cst_27 : f32 to vector<2x32xf32>
    %56 = arith.cmpf oge, %54, %55 : vector<2x32xf32>
    %cst_28 = arith.constant 2.000000e-01 : f32
    %57 = vector.broadcast %cst_28 : f32 to vector<2x32xf32>
    %58 = arith.mulf %57, %54 : vector<2x32xf32>
    %59 = arith.select %56, %54, %58 : vector<2x32xi1>, vector<2x32xf32>
    %c128 = arith.constant 128 : index
    %c0_29 = arith.constant 0 : index
    %60 = vector.load %arg3[%c128, %c0_29] : memref<576x128xf32, #tpu.memory_space<vmem>>, vector<32x128xf32>
    %61 = vector.extract_strided_slice %60 {offsets = [0, 0], sizes = [32, 32], strides = [1, 1]} : vector<32x128xf32> to vector<32x32xf32>
    %cst_30 = arith.constant dense<0.000000e+00> : vector<2x32xf32>
    %62 = tpu.matmul %59, %61, %cst_30 {dimension_numbers = #tpu.dot_dimension_numbers<[1], [0], [0], [1], [0, 0, 1, 1], [], []>} : vector<2x32xf32>, vector<32x32xf32>, vector<2x32xf32> -> vector<2x32xf32>
    %c5 = arith.constant 5 : index
    %c0_31 = arith.constant 0 : index
    %63 = vector.load %arg4[%c5, %c0_31] : memref<17x128xf32, #tpu.memory_space<vmem>>, vector<1x128xf32>
    %64 = vector.extract_strided_slice %63 {offsets = [0, 0], sizes = [1, 32], strides = [1, 1]} : vector<1x128xf32> to vector<1x32xf32>
    %65 = vector.broadcast %64 : vector<1x32xf32> to vector<2x32xf32>
    %66 = arith.addf %62, %65 : vector<2x32xf32>
    %cst_32 = arith.constant 0.000000e+00 : f32
    %67 = vector.broadcast %cst_32 : f32 to vector<2x32xf32>
    %68 = arith.cmpf oge, %66, %67 : vector<2x32xf32>
    %cst_33 = arith.constant 2.000000e-01 : f32
    %69 = vector.broadcast %cst_33 : f32 to vector<2x32xf32>
    %70 = arith.mulf %69, %66 : vector<2x32xf32>
    %71 = arith.select %68, %66, %70 : vector<2x32xi1>, vector<2x32xf32>
    %c160 = arith.constant 160 : index
    %c0_34 = arith.constant 0 : index
    %72 = vector.load %arg3[%c160, %c0_34] : memref<576x128xf32, #tpu.memory_space<vmem>>, vector<32x128xf32>
    %73 = vector.extract_strided_slice %72 {offsets = [0, 0], sizes = [32, 32], strides = [1, 1]} : vector<32x128xf32> to vector<32x32xf32>
    %cst_35 = arith.constant dense<0.000000e+00> : vector<2x32xf32>
    %74 = tpu.matmul %71, %73, %cst_35 {dimension_numbers = #tpu.dot_dimension_numbers<[1], [0], [0], [1], [0, 0, 1, 1], [], []>} : vector<2x32xf32>, vector<32x32xf32>, vector<2x32xf32> -> vector<2x32xf32>
    %c6 = arith.constant 6 : index
    %c0_36 = arith.constant 0 : index
    %75 = vector.load %arg4[%c6, %c0_36] : memref<17x128xf32, #tpu.memory_space<vmem>>, vector<1x128xf32>
    %76 = vector.extract_strided_slice %75 {offsets = [0, 0], sizes = [1, 32], strides = [1, 1]} : vector<1x128xf32> to vector<1x32xf32>
    %77 = vector.broadcast %76 : vector<1x32xf32> to vector<2x32xf32>
    %78 = arith.addf %74, %77 : vector<2x32xf32>
    %cst_37 = arith.constant 0.000000e+00 : f32
    %79 = vector.broadcast %cst_37 : f32 to vector<2x32xf32>
    %80 = arith.cmpf oge, %78, %79 : vector<2x32xf32>
    %cst_38 = arith.constant 2.000000e-01 : f32
    %81 = vector.broadcast %cst_38 : f32 to vector<2x32xf32>
    %82 = arith.mulf %81, %78 : vector<2x32xf32>
    %83 = arith.select %80, %78, %82 : vector<2x32xi1>, vector<2x32xf32>
    %c192 = arith.constant 192 : index
    %c0_39 = arith.constant 0 : index
    %84 = vector.load %arg3[%c192, %c0_39] : memref<576x128xf32, #tpu.memory_space<vmem>>, vector<32x128xf32>
    %85 = vector.extract_strided_slice %84 {offsets = [0, 0], sizes = [32, 32], strides = [1, 1]} : vector<32x128xf32> to vector<32x32xf32>
    %cst_40 = arith.constant dense<0.000000e+00> : vector<2x32xf32>
    %86 = tpu.matmul %83, %85, %cst_40 {dimension_numbers = #tpu.dot_dimension_numbers<[1], [0], [0], [1], [0, 0, 1, 1], [], []>} : vector<2x32xf32>, vector<32x32xf32>, vector<2x32xf32> -> vector<2x32xf32>
    %c7 = arith.constant 7 : index
    %c0_41 = arith.constant 0 : index
    %87 = vector.load %arg4[%c7, %c0_41] : memref<17x128xf32, #tpu.memory_space<vmem>>, vector<1x128xf32>
    %88 = vector.extract_strided_slice %87 {offsets = [0, 0], sizes = [1, 32], strides = [1, 1]} : vector<1x128xf32> to vector<1x32xf32>
    %89 = vector.broadcast %88 : vector<1x32xf32> to vector<2x32xf32>
    %90 = arith.addf %86, %89 : vector<2x32xf32>
    %c224 = arith.constant 224 : index
    %c0_42 = arith.constant 0 : index
    %91 = vector.load %arg3[%c224, %c0_42] : memref<576x128xf32, #tpu.memory_space<vmem>>, vector<32x128xf32>
    %92 = vector.extract_strided_slice %91 {offsets = [0, 0], sizes = [32, 32], strides = [1, 1]} : vector<32x128xf32> to vector<32x32xf32>
    %c256 = arith.constant 256 : index
    %c0_43 = arith.constant 0 : index
    %93 = vector.load %arg3[%c256, %c0_43] : memref<576x128xf32, #tpu.memory_space<vmem>>, vector<32x128xf32>
    %94 = vector.extract_strided_slice %93 {offsets = [0, 0], sizes = [32, 32], strides = [1, 1]} : vector<32x128xf32> to vector<32x32xf32>
    %cst_44 = arith.constant dense<0.000000e+00> : vector<2x32xf32>
    %95 = tpu.matmul %90, %94, %cst_44 {dimension_numbers = #tpu.dot_dimension_numbers<[1], [0], [0], [1], [0, 0, 1, 1], [], []>} : vector<2x32xf32>, vector<32x32xf32>, vector<2x32xf32> -> vector<2x32xf32>
    %c8 = arith.constant 8 : index
    %c0_45 = arith.constant 0 : index
    %96 = vector.load %arg4[%c8, %c0_45] : memref<17x128xf32, #tpu.memory_space<vmem>>, vector<1x128xf32>
    %97 = vector.extract_strided_slice %96 {offsets = [0, 0], sizes = [1, 32], strides = [1, 1]} : vector<1x128xf32> to vector<1x32xf32>
    %98 = vector.broadcast %97 : vector<1x32xf32> to vector<2x32xf32>
    %99 = arith.addf %95, %98 : vector<2x32xf32>
    %cst_46 = arith.constant dense<0.000000e+00> : vector<16x32xf32>
    %100 = tpu.matmul %44, %92, %cst_46 {dimension_numbers = #tpu.dot_dimension_numbers<[1], [0], [0], [1], [0, 0, 1, 1], [], []>} : vector<16x32xf32>, vector<32x32xf32>, vector<16x32xf32> -> vector<16x32xf32>
    %101 = vector.shape_cast %100 : vector<16x32xf32> to vector<2x8x32xf32>
    %102 = vector.shape_cast %99 : vector<2x32xf32> to vector<2x1x32xf32>
    %103 = vector.broadcast %102 : vector<2x1x32xf32> to vector<2x8x32xf32>
    %104 = arith.addf %101, %103 : vector<2x8x32xf32>
    %cst_47 = arith.constant 0.000000e+00 : f32
    %105 = vector.broadcast %cst_47 : f32 to vector<2x8x32xf32>
    %106 = arith.cmpf oge, %104, %105 : vector<2x8x32xf32>
    %cst_48 = arith.constant 2.000000e-01 : f32
    %107 = vector.broadcast %cst_48 : f32 to vector<2x8x32xf32>
    %108 = arith.mulf %107, %104 : vector<2x8x32xf32>
    %109 = arith.select %106, %104, %108 : vector<2x8x32xi1>, vector<2x8x32xf32>
    %110 = vector.shape_cast %109 : vector<2x8x32xf32> to vector<16x32xf32>
    %c288 = arith.constant 288 : index
    %c0_49 = arith.constant 0 : index
    %111 = vector.load %arg3[%c288, %c0_49] : memref<576x128xf32, #tpu.memory_space<vmem>>, vector<32x128xf32>
    %112 = vector.extract_strided_slice %111 {offsets = [0, 0], sizes = [32, 32], strides = [1, 1]} : vector<32x128xf32> to vector<32x32xf32>
    %cst_50 = arith.constant dense<0.000000e+00> : vector<16x32xf32>
    %113 = tpu.matmul %110, %112, %cst_50 {dimension_numbers = #tpu.dot_dimension_numbers<[1], [0], [0], [1], [0, 0, 1, 1], [], []>} : vector<16x32xf32>, vector<32x32xf32>, vector<16x32xf32> -> vector<16x32xf32>
    %c9 = arith.constant 9 : index
    %c0_51 = arith.constant 0 : index
    %114 = vector.load %arg4[%c9, %c0_51] : memref<17x128xf32, #tpu.memory_space<vmem>>, vector<1x128xf32>
    %115 = vector.extract_strided_slice %114 {offsets = [0, 0], sizes = [1, 32], strides = [1, 1]} : vector<1x128xf32> to vector<1x32xf32>
    %116 = vector.broadcast %115 : vector<1x32xf32> to vector<16x32xf32>
    %117 = arith.addf %113, %116 : vector<16x32xf32>
    %cst_52 = arith.constant 0.000000e+00 : f32
    %118 = vector.broadcast %cst_52 : f32 to vector<16x32xf32>
    %119 = arith.cmpf oge, %117, %118 : vector<16x32xf32>
    %cst_53 = arith.constant 2.000000e-01 : f32
    %120 = vector.broadcast %cst_53 : f32 to vector<16x32xf32>
    %121 = arith.mulf %120, %117 : vector<16x32xf32>
    %122 = arith.select %119, %117, %121 : vector<16x32xi1>, vector<16x32xf32>
    %c320 = arith.constant 320 : index
    %c0_54 = arith.constant 0 : index
    %123 = vector.load %arg3[%c320, %c0_54] : memref<576x128xf32, #tpu.memory_space<vmem>>, vector<32x128xf32>
    %124 = vector.extract_strided_slice %123 {offsets = [0, 0], sizes = [32, 32], strides = [1, 1]} : vector<32x128xf32> to vector<32x32xf32>
    %cst_55 = arith.constant dense<0.000000e+00> : vector<16x32xf32>
    %125 = tpu.matmul %122, %124, %cst_55 {dimension_numbers = #tpu.dot_dimension_numbers<[1], [0], [0], [1], [0, 0, 1, 1], [], []>} : vector<16x32xf32>, vector<32x32xf32>, vector<16x32xf32> -> vector<16x32xf32>
    %c10 = arith.constant 10 : index
    %c0_56 = arith.constant 0 : index
    %126 = vector.load %arg4[%c10, %c0_56] : memref<17x128xf32, #tpu.memory_space<vmem>>, vector<1x128xf32>
    %127 = vector.extract_strided_slice %126 {offsets = [0, 0], sizes = [1, 32], strides = [1, 1]} : vector<1x128xf32> to vector<1x32xf32>
    %128 = vector.broadcast %127 : vector<1x32xf32> to vector<16x32xf32>
    %129 = arith.addf %125, %128 : vector<16x32xf32>
    %cst_57 = arith.constant 0.000000e+00 : f32
    %130 = vector.broadcast %cst_57 : f32 to vector<16x32xf32>
    %131 = arith.cmpf oge, %129, %130 : vector<16x32xf32>
    %cst_58 = arith.constant 2.000000e-01 : f32
    %132 = vector.broadcast %cst_58 : f32 to vector<16x32xf32>
    %133 = arith.mulf %132, %129 : vector<16x32xf32>
    %134 = arith.select %131, %129, %133 : vector<16x32xi1>, vector<16x32xf32>
    %c352 = arith.constant 352 : index
    %c0_59 = arith.constant 0 : index
    %135 = vector.load %arg3[%c352, %c0_59] : memref<576x128xf32, #tpu.memory_space<vmem>>, vector<32x128xf32>
    %136 = vector.extract_strided_slice %135 {offsets = [0, 0], sizes = [32, 32], strides = [1, 1]} : vector<32x128xf32> to vector<32x32xf32>
    %cst_60 = arith.constant dense<0.000000e+00> : vector<16x32xf32>
    %137 = tpu.matmul %134, %136, %cst_60 {dimension_numbers = #tpu.dot_dimension_numbers<[1], [0], [0], [1], [0, 0, 1, 1], [], []>} : vector<16x32xf32>, vector<32x32xf32>, vector<16x32xf32> -> vector<16x32xf32>
    %c11 = arith.constant 11 : index
    %c0_61 = arith.constant 0 : index
    %138 = vector.load %arg4[%c11, %c0_61] : memref<17x128xf32, #tpu.memory_space<vmem>>, vector<1x128xf32>
    %139 = vector.extract_strided_slice %138 {offsets = [0, 0], sizes = [1, 32], strides = [1, 1]} : vector<1x128xf32> to vector<1x32xf32>
    %140 = vector.broadcast %139 : vector<1x32xf32> to vector<16x32xf32>
    %141 = arith.addf %137, %140 : vector<16x32xf32>
    %cst_62 = arith.constant 0.000000e+00 : f32
    %142 = vector.broadcast %cst_62 : f32 to vector<16x32xf32>
    %143 = arith.cmpf oge, %141, %142 : vector<16x32xf32>
    %cst_63 = arith.constant 2.000000e-01 : f32
    %144 = vector.broadcast %cst_63 : f32 to vector<16x32xf32>
    %145 = arith.mulf %144, %141 : vector<16x32xf32>
    %146 = arith.select %143, %141, %145 : vector<16x32xi1>, vector<16x32xf32>
    %c384 = arith.constant 384 : index
    %c0_64 = arith.constant 0 : index
    %147 = vector.load %arg3[%c384, %c0_64] : memref<576x128xf32, #tpu.memory_space<vmem>>, vector<32x128xf32>
    %c416 = arith.constant 416 : index
    %c0_65 = arith.constant 0 : index
    %148 = vector.load %arg3[%c416, %c0_65] : memref<576x128xf32, #tpu.memory_space<vmem>>, vector<32x128xf32>
    %c12 = arith.constant 12 : index
    %c0_66 = arith.constant 0 : index
    %149 = vector.load %arg4[%c12, %c0_66] : memref<17x128xf32, #tpu.memory_space<vmem>>, vector<1x128xf32>
    %cst_67 = arith.constant dense<0.000000e+00> : vector<16x128xf32>
    %150 = tpu.matmul %146, %147, %cst_67 {dimension_numbers = #tpu.dot_dimension_numbers<[1], [0], [0], [1], [0, 0, 1, 1], [], []>} : vector<16x32xf32>, vector<32x128xf32>, vector<16x128xf32> -> vector<16x128xf32>
    %151 = vector.broadcast %149 : vector<1x128xf32> to vector<16x128xf32>
    %152 = arith.addf %150, %151 : vector<16x128xf32>
    %153 = vector.shape_cast %152 : vector<16x128xf32> to vector<2x8x128xf32>
    %cst_68 = arith.constant 0.000000e+00 : f32
    %154 = vector.broadcast %cst_68 : f32 to vector<2x32xf32>
    %cst_69 = arith.constant 0.000000e+00 : f32
    %155 = vector.broadcast %cst_69 : f32 to vector<2x32xf32>
    %156 = vector.extract_strided_slice %153 {offsets = [0, 0, 0], sizes = [2, 1, 128], strides = [1, 1, 1]} : vector<2x8x128xf32> to vector<2x1x128xf32>
    %157 = vector.shape_cast %156 : vector<2x1x128xf32> to vector<2x128xf32>
    %cst_70 = arith.constant dense<0.000000e+00> : vector<2x128xf32>
    %158 = tpu.matmul %154, %148, %cst_70 {dimension_numbers = #tpu.dot_dimension_numbers<[1], [0], [0], [1], [0, 0, 1, 1], [], []>} : vector<2x32xf32>, vector<32x128xf32>, vector<2x128xf32> -> vector<2x128xf32>
    %159 = arith.addf %157, %158 : vector<2x128xf32>
    %160 = arith.negf %159 : vector<2x128xf32>
    %161 = math.exp %160 : vector<2x128xf32>
    %cst_71 = arith.constant 1.000000e+00 : f32
    %162 = vector.broadcast %cst_71 : f32 to vector<2x128xf32>
    %163 = arith.addf %162, %161 : vector<2x128xf32>
    %164 = arith.divf %162, %163 : vector<2x128xf32>
    %165 = vector.extract_strided_slice %159 {offsets = [0, 64], sizes = [2, 32], strides = [1, 1]} : vector<2x128xf32> to vector<2x32xf32>
    %166 = math.tanh %165 : vector<2x32xf32>
    %167 = vector.extract_strided_slice %164 {offsets = [0, 32], sizes = [2, 32], strides = [1, 1]} : vector<2x128xf32> to vector<2x32xf32>
    %168 = arith.mulf %167, %155 : vector<2x32xf32>
    %169 = vector.extract_strided_slice %164 {offsets = [0, 0], sizes = [2, 32], strides = [1, 1]} : vector<2x128xf32> to vector<2x32xf32>
    %170 = arith.mulf %169, %166 : vector<2x32xf32>
    %171 = arith.addf %168, %170 : vector<2x32xf32>
    %172 = vector.extract_strided_slice %164 {offsets = [0, 96], sizes = [2, 32], strides = [1, 1]} : vector<2x128xf32> to vector<2x32xf32>
    %173 = math.tanh %171 : vector<2x32xf32>
    %174 = arith.mulf %172, %173 : vector<2x32xf32>
    %c0_72 = arith.constant 0 : index
    %c0_73 = arith.constant 0 : index
    %c0_74 = arith.constant 0 : index
    %175 = vector.load %arg6[%c0_72, %c0_73, %c0_74] : memref<2x8x32xf32, #tpu.memory_space<vmem>>, vector<2x1x32xf32>
    %176 = vector.shape_cast %175 : vector<2x1x32xf32> to vector<2x32xf32>
    %177 = vector.shape_cast %174 : vector<2x32xf32> to vector<2x1x32xf32>
    tpu.vector_store %arg6[%c0_72, %c0_73, %c0_74], %177 {strides = array<i32>} : memref<2x8x32xf32, #tpu.memory_space<vmem>>, vector<2x1x32xf32>,
    %178 = vector.extract_strided_slice %153 {offsets = [0, 1, 0], sizes = [2, 1, 128], strides = [1, 1, 1]} : vector<2x8x128xf32> to vector<2x1x128xf32>
    %179 = vector.shape_cast %178 : vector<2x1x128xf32> to vector<2x128xf32>
    %cst_75 = arith.constant dense<0.000000e+00> : vector<2x128xf32>
    %180 = tpu.matmul %174, %148, %cst_75 {dimension_numbers = #tpu.dot_dimension_numbers<[1], [0], [0], [1], [0, 0, 1, 1], [], []>} : vector<2x32xf32>, vector<32x128xf32>, vector<2x128xf32> -> vector<2x128xf32>
    %181 = arith.addf %179, %180 : vector<2x128xf32>
    %182 = arith.negf %181 : vector<2x128xf32>
    %183 = math.exp %182 : vector<2x128xf32>
    %cst_76 = arith.constant 1.000000e+00 : f32
    %184 = vector.broadcast %cst_76 : f32 to vector<2x128xf32>
    %185 = arith.addf %184, %183 : vector<2x128xf32>
    %186 = arith.divf %184, %185 : vector<2x128xf32>
    %187 = vector.extract_strided_slice %181 {offsets = [0, 64], sizes = [2, 32], strides = [1, 1]} : vector<2x128xf32> to vector<2x32xf32>
    %188 = math.tanh %187 : vector<2x32xf32>
    %189 = vector.extract_strided_slice %186 {offsets = [0, 32], sizes = [2, 32], strides = [1, 1]} : vector<2x128xf32> to vector<2x32xf32>
    %190 = arith.mulf %189, %171 : vector<2x32xf32>
    %191 = vector.extract_strided_slice %186 {offsets = [0, 0], sizes = [2, 32], strides = [1, 1]} : vector<2x128xf32> to vector<2x32xf32>
    %192 = arith.mulf %191, %188 : vector<2x32xf32>
    %193 = arith.addf %190, %192 : vector<2x32xf32>
    %194 = vector.extract_strided_slice %186 {offsets = [0, 96], sizes = [2, 32], strides = [1, 1]} : vector<2x128xf32> to vector<2x32xf32>
    %195 = math.tanh %193 : vector<2x32xf32>
    %196 = arith.mulf %194, %195 : vector<2x32xf32>
    %c0_77 = arith.constant 0 : index
    %c1_78 = arith.constant 1 : index
    %c0_79 = arith.constant 0 : index
    %197 = vector.load %arg6[%c0_77, %c1_78, %c0_79] : memref<2x8x32xf32, #tpu.memory_space<vmem>>, vector<2x1x32xf32>
    %198 = vector.shape_cast %197 : vector<2x1x32xf32> to vector<2x32xf32>
    %199 = vector.shape_cast %196 : vector<2x32xf32> to vector<2x1x32xf32>
    tpu.vector_store %arg6[%c0_77, %c1_78, %c0_79], %199 {strides = array<i32>} : memref<2x8x32xf32, #tpu.memory_space<vmem>>, vector<2x1x32xf32>,
    %200 = vector.extract_strided_slice %153 {offsets = [0, 2, 0], sizes = [2, 1, 128], strides = [1, 1, 1]} : vector<2x8x128xf32> to vector<2x1x128xf32>
    %201 = vector.shape_cast %200 : vector<2x1x128xf32> to vector<2x128xf32>
    %cst_80 = arith.constant dense<0.000000e+00> : vector<2x128xf32>
    %202 = tpu.matmul %196, %148, %cst_80 {dimension_numbers = #tpu.dot_dimension_numbers<[1], [0], [0], [1], [0, 0, 1, 1], [], []>} : vector<2x32xf32>, vector<32x128xf32>, vector<2x128xf32> -> vector<2x128xf32>
    %203 = arith.addf %201, %202 : vector<2x128xf32>
    %204 = arith.negf %203 : vector<2x128xf32>
    %205 = math.exp %204 : vector<2x128xf32>
    %cst_81 = arith.constant 1.000000e+00 : f32
    %206 = vector.broadcast %cst_81 : f32 to vector<2x128xf32>
    %207 = arith.addf %206, %205 : vector<2x128xf32>
    %208 = arith.divf %206, %207 : vector<2x128xf32>
    %209 = vector.extract_strided_slice %203 {offsets = [0, 64], sizes = [2, 32], strides = [1, 1]} : vector<2x128xf32> to vector<2x32xf32>
    %210 = math.tanh %209 : vector<2x32xf32>
    %211 = vector.extract_strided_slice %208 {offsets = [0, 32], sizes = [2, 32], strides = [1, 1]} : vector<2x128xf32> to vector<2x32xf32>
    %212 = arith.mulf %211, %193 : vector<2x32xf32>
    %213 = vector.extract_strided_slice %208 {offsets = [0, 0], sizes = [2, 32], strides = [1, 1]} : vector<2x128xf32> to vector<2x32xf32>
    %214 = arith.mulf %213, %210 : vector<2x32xf32>
    %215 = arith.addf %212, %214 : vector<2x32xf32>
    %216 = vector.extract_strided_slice %208 {offsets = [0, 96], sizes = [2, 32], strides = [1, 1]} : vector<2x128xf32> to vector<2x32xf32>
    %217 = math.tanh %215 : vector<2x32xf32>
    %218 = arith.mulf %216, %217 : vector<2x32xf32>
    %c0_82 = arith.constant 0 : index
    %c2_83 = arith.constant 2 : index
    %c0_84 = arith.constant 0 : index
    %219 = vector.load %arg6[%c0_82, %c2_83, %c0_84] : memref<2x8x32xf32, #tpu.memory_space<vmem>>, vector<2x1x32xf32>
    %220 = vector.shape_cast %219 : vector<2x1x32xf32> to vector<2x32xf32>
    %221 = vector.shape_cast %218 : vector<2x32xf32> to vector<2x1x32xf32>
    tpu.vector_store %arg6[%c0_82, %c2_83, %c0_84], %221 {strides = array<i32>} : memref<2x8x32xf32, #tpu.memory_space<vmem>>, vector<2x1x32xf32>,
    %222 = vector.extract_strided_slice %153 {offsets = [0, 3, 0], sizes = [2, 1, 128], strides = [1, 1, 1]} : vector<2x8x128xf32> to vector<2x1x128xf32>
    %223 = vector.shape_cast %222 : vector<2x1x128xf32> to vector<2x128xf32>
    %cst_85 = arith.constant dense<0.000000e+00> : vector<2x128xf32>
    %224 = tpu.matmul %218, %148, %cst_85 {dimension_numbers = #tpu.dot_dimension_numbers<[1], [0], [0], [1], [0, 0, 1, 1], [], []>} : vector<2x32xf32>, vector<32x128xf32>, vector<2x128xf32> -> vector<2x128xf32>
    %225 = arith.addf %223, %224 : vector<2x128xf32>
    %226 = arith.negf %225 : vector<2x128xf32>
    %227 = math.exp %226 : vector<2x128xf32>
    %cst_86 = arith.constant 1.000000e+00 : f32
    %228 = vector.broadcast %cst_86 : f32 to vector<2x128xf32>
    %229 = arith.addf %228, %227 : vector<2x128xf32>
    %230 = arith.divf %228, %229 : vector<2x128xf32>
    %231 = vector.extract_strided_slice %225 {offsets = [0, 64], sizes = [2, 32], strides = [1, 1]} : vector<2x128xf32> to vector<2x32xf32>
    %232 = math.tanh %231 : vector<2x32xf32>
    %233 = vector.extract_strided_slice %230 {offsets = [0, 32], sizes = [2, 32], strides = [1, 1]} : vector<2x128xf32> to vector<2x32xf32>
    %234 = arith.mulf %233, %215 : vector<2x32xf32>
    %235 = vector.extract_strided_slice %230 {offsets = [0, 0], sizes = [2, 32], strides = [1, 1]} : vector<2x128xf32> to vector<2x32xf32>
    %236 = arith.mulf %235, %232 : vector<2x32xf32>
    %237 = arith.addf %234, %236 : vector<2x32xf32>
    %238 = vector.extract_strided_slice %230 {offsets = [0, 96], sizes = [2, 32], strides = [1, 1]} : vector<2x128xf32> to vector<2x32xf32>
    %239 = math.tanh %237 : vector<2x32xf32>
    %240 = arith.mulf %238, %239 : vector<2x32xf32>
    %c0_87 = arith.constant 0 : index
    %c3_88 = arith.constant 3 : index
    %c0_89 = arith.constant 0 : index
    %241 = vector.load %arg6[%c0_87, %c3_88, %c0_89] : memref<2x8x32xf32, #tpu.memory_space<vmem>>, vector<2x1x32xf32>
    %242 = vector.shape_cast %241 : vector<2x1x32xf32> to vector<2x32xf32>
    %243 = vector.shape_cast %240 : vector<2x32xf32> to vector<2x1x32xf32>
    tpu.vector_store %arg6[%c0_87, %c3_88, %c0_89], %243 {strides = array<i32>} : memref<2x8x32xf32, #tpu.memory_space<vmem>>, vector<2x1x32xf32>,
    %244 = vector.extract_strided_slice %153 {offsets = [0, 4, 0], sizes = [2, 1, 128], strides = [1, 1, 1]} : vector<2x8x128xf32> to vector<2x1x128xf32>
    %245 = vector.shape_cast %244 : vector<2x1x128xf32> to vector<2x128xf32>
    %cst_90 = arith.constant dense<0.000000e+00> : vector<2x128xf32>
    %246 = tpu.matmul %240, %148, %cst_90 {dimension_numbers = #tpu.dot_dimension_numbers<[1], [0], [0], [1], [0, 0, 1, 1], [], []>} : vector<2x32xf32>, vector<32x128xf32>, vector<2x128xf32> -> vector<2x128xf32>
    %247 = arith.addf %245, %246 : vector<2x128xf32>
    %248 = arith.negf %247 : vector<2x128xf32>
    %249 = math.exp %248 : vector<2x128xf32>
    %cst_91 = arith.constant 1.000000e+00 : f32
    %250 = vector.broadcast %cst_91 : f32 to vector<2x128xf32>
    %251 = arith.addf %250, %249 : vector<2x128xf32>
    %252 = arith.divf %250, %251 : vector<2x128xf32>
    %253 = vector.extract_strided_slice %247 {offsets = [0, 64], sizes = [2, 32], strides = [1, 1]} : vector<2x128xf32> to vector<2x32xf32>
    %254 = math.tanh %253 : vector<2x32xf32>
    %255 = vector.extract_strided_slice %252 {offsets = [0, 32], sizes = [2, 32], strides = [1, 1]} : vector<2x128xf32> to vector<2x32xf32>
    %256 = arith.mulf %255, %237 : vector<2x32xf32>
    %257 = vector.extract_strided_slice %252 {offsets = [0, 0], sizes = [2, 32], strides = [1, 1]} : vector<2x128xf32> to vector<2x32xf32>
    %258 = arith.mulf %257, %254 : vector<2x32xf32>
    %259 = arith.addf %256, %258 : vector<2x32xf32>
    %260 = vector.extract_strided_slice %252 {offsets = [0, 96], sizes = [2, 32], strides = [1, 1]} : vector<2x128xf32> to vector<2x32xf32>
    %261 = math.tanh %259 : vector<2x32xf32>
    %262 = arith.mulf %260, %261 : vector<2x32xf32>
    %c0_92 = arith.constant 0 : index
    %c4_93 = arith.constant 4 : index
    %c0_94 = arith.constant 0 : index
    %263 = vector.load %arg6[%c0_92, %c4_93, %c0_94] : memref<2x8x32xf32, #tpu.memory_space<vmem>>, vector<2x1x32xf32>
    %264 = vector.shape_cast %263 : vector<2x1x32xf32> to vector<2x32xf32>
    %265 = vector.shape_cast %262 : vector<2x32xf32> to vector<2x1x32xf32>
    tpu.vector_store %arg6[%c0_92, %c4_93, %c0_94], %265 {strides = array<i32>} : memref<2x8x32xf32, #tpu.memory_space<vmem>>, vector<2x1x32xf32>,
    %266 = vector.extract_strided_slice %153 {offsets = [0, 5, 0], sizes = [2, 1, 128], strides = [1, 1, 1]} : vector<2x8x128xf32> to vector<2x1x128xf32>
    %267 = vector.shape_cast %266 : vector<2x1x128xf32> to vector<2x128xf32>
    %cst_95 = arith.constant dense<0.000000e+00> : vector<2x128xf32>
    %268 = tpu.matmul %262, %148, %cst_95 {dimension_numbers = #tpu.dot_dimension_numbers<[1], [0], [0], [1], [0, 0, 1, 1], [], []>} : vector<2x32xf32>, vector<32x128xf32>, vector<2x128xf32> -> vector<2x128xf32>
    %269 = arith.addf %267, %268 : vector<2x128xf32>
    %270 = arith.negf %269 : vector<2x128xf32>
    %271 = math.exp %270 : vector<2x128xf32>
    %cst_96 = arith.constant 1.000000e+00 : f32
    %272 = vector.broadcast %cst_96 : f32 to vector<2x128xf32>
    %273 = arith.addf %272, %271 : vector<2x128xf32>
    %274 = arith.divf %272, %273 : vector<2x128xf32>
    %275 = vector.extract_strided_slice %269 {offsets = [0, 64], sizes = [2, 32], strides = [1, 1]} : vector<2x128xf32> to vector<2x32xf32>
    %276 = math.tanh %275 : vector<2x32xf32>
    %277 = vector.extract_strided_slice %274 {offsets = [0, 32], sizes = [2, 32], strides = [1, 1]} : vector<2x128xf32> to vector<2x32xf32>
    %278 = arith.mulf %277, %259 : vector<2x32xf32>
    %279 = vector.extract_strided_slice %274 {offsets = [0, 0], sizes = [2, 32], strides = [1, 1]} : vector<2x128xf32> to vector<2x32xf32>
    %280 = arith.mulf %279, %276 : vector<2x32xf32>
    %281 = arith.addf %278, %280 : vector<2x32xf32>
    %282 = vector.extract_strided_slice %274 {offsets = [0, 96], sizes = [2, 32], strides = [1, 1]} : vector<2x128xf32> to vector<2x32xf32>
    %283 = math.tanh %281 : vector<2x32xf32>
    %284 = arith.mulf %282, %283 : vector<2x32xf32>
    %c0_97 = arith.constant 0 : index
    %c5_98 = arith.constant 5 : index
    %c0_99 = arith.constant 0 : index
    %285 = vector.load %arg6[%c0_97, %c5_98, %c0_99] : memref<2x8x32xf32, #tpu.memory_space<vmem>>, vector<2x1x32xf32>
    %286 = vector.shape_cast %285 : vector<2x1x32xf32> to vector<2x32xf32>
    %287 = vector.shape_cast %284 : vector<2x32xf32> to vector<2x1x32xf32>
    tpu.vector_store %arg6[%c0_97, %c5_98, %c0_99], %287 {strides = array<i32>} : memref<2x8x32xf32, #tpu.memory_space<vmem>>, vector<2x1x32xf32>,
    %288 = vector.extract_strided_slice %153 {offsets = [0, 6, 0], sizes = [2, 1, 128], strides = [1, 1, 1]} : vector<2x8x128xf32> to vector<2x1x128xf32>
    %289 = vector.shape_cast %288 : vector<2x1x128xf32> to vector<2x128xf32>
    %cst_100 = arith.constant dense<0.000000e+00> : vector<2x128xf32>
    %290 = tpu.matmul %284, %148, %cst_100 {dimension_numbers = #tpu.dot_dimension_numbers<[1], [0], [0], [1], [0, 0, 1, 1], [], []>} : vector<2x32xf32>, vector<32x128xf32>, vector<2x128xf32> -> vector<2x128xf32>
    %291 = arith.addf %289, %290 : vector<2x128xf32>
    %292 = arith.negf %291 : vector<2x128xf32>
    %293 = math.exp %292 : vector<2x128xf32>
    %cst_101 = arith.constant 1.000000e+00 : f32
    %294 = vector.broadcast %cst_101 : f32 to vector<2x128xf32>
    %295 = arith.addf %294, %293 : vector<2x128xf32>
    %296 = arith.divf %294, %295 : vector<2x128xf32>
    %297 = vector.extract_strided_slice %291 {offsets = [0, 64], sizes = [2, 32], strides = [1, 1]} : vector<2x128xf32> to vector<2x32xf32>
    %298 = math.tanh %297 : vector<2x32xf32>
    %299 = vector.extract_strided_slice %296 {offsets = [0, 32], sizes = [2, 32], strides = [1, 1]} : vector<2x128xf32> to vector<2x32xf32>
    %300 = arith.mulf %299, %281 : vector<2x32xf32>
    %301 = vector.extract_strided_slice %296 {offsets = [0, 0], sizes = [2, 32], strides = [1, 1]} : vector<2x128xf32> to vector<2x32xf32>
    %302 = arith.mulf %301, %298 : vector<2x32xf32>
    %303 = arith.addf %300, %302 : vector<2x32xf32>
    %304 = vector.extract_strided_slice %296 {offsets = [0, 96], sizes = [2, 32], strides = [1, 1]} : vector<2x128xf32> to vector<2x32xf32>
    %305 = math.tanh %303 : vector<2x32xf32>
    %306 = arith.mulf %304, %305 : vector<2x32xf32>
    %c0_102 = arith.constant 0 : index
    %c6_103 = arith.constant 6 : index
    %c0_104 = arith.constant 0 : index
    %307 = vector.load %arg6[%c0_102, %c6_103, %c0_104] : memref<2x8x32xf32, #tpu.memory_space<vmem>>, vector<2x1x32xf32>
    %308 = vector.shape_cast %307 : vector<2x1x32xf32> to vector<2x32xf32>
    %309 = vector.shape_cast %306 : vector<2x32xf32> to vector<2x1x32xf32>
    tpu.vector_store %arg6[%c0_102, %c6_103, %c0_104], %309 {strides = array<i32>} : memref<2x8x32xf32, #tpu.memory_space<vmem>>, vector<2x1x32xf32>,
    %310 = vector.extract_strided_slice %153 {offsets = [0, 7, 0], sizes = [2, 1, 128], strides = [1, 1, 1]} : vector<2x8x128xf32> to vector<2x1x128xf32>
    %311 = vector.shape_cast %310 : vector<2x1x128xf32> to vector<2x128xf32>
    %cst_105 = arith.constant dense<0.000000e+00> : vector<2x128xf32>
    %312 = tpu.matmul %306, %148, %cst_105 {dimension_numbers = #tpu.dot_dimension_numbers<[1], [0], [0], [1], [0, 0, 1, 1], [], []>} : vector<2x32xf32>, vector<32x128xf32>, vector<2x128xf32> -> vector<2x128xf32>
    %313 = arith.addf %311, %312 : vector<2x128xf32>
    %314 = arith.negf %313 : vector<2x128xf32>
    %315 = math.exp %314 : vector<2x128xf32>
    %cst_106 = arith.constant 1.000000e+00 : f32
    %316 = vector.broadcast %cst_106 : f32 to vector<2x128xf32>
    %317 = arith.addf %316, %315 : vector<2x128xf32>
    %318 = arith.divf %316, %317 : vector<2x128xf32>
    %319 = vector.extract_strided_slice %313 {offsets = [0, 64], sizes = [2, 32], strides = [1, 1]} : vector<2x128xf32> to vector<2x32xf32>
    %320 = math.tanh %319 : vector<2x32xf32>
    %321 = vector.extract_strided_slice %318 {offsets = [0, 32], sizes = [2, 32], strides = [1, 1]} : vector<2x128xf32> to vector<2x32xf32>
    %322 = arith.mulf %321, %303 : vector<2x32xf32>
    %323 = vector.extract_strided_slice %318 {offsets = [0, 0], sizes = [2, 32], strides = [1, 1]} : vector<2x128xf32> to vector<2x32xf32>
    %324 = arith.mulf %323, %320 : vector<2x32xf32>
    %325 = arith.addf %322, %324 : vector<2x32xf32>
    %326 = vector.extract_strided_slice %318 {offsets = [0, 96], sizes = [2, 32], strides = [1, 1]} : vector<2x128xf32> to vector<2x32xf32>
    %327 = math.tanh %325 : vector<2x32xf32>
    %328 = arith.mulf %326, %327 : vector<2x32xf32>
    %c0_107 = arith.constant 0 : index
    %c7_108 = arith.constant 7 : index
    %c0_109 = arith.constant 0 : index
    %329 = vector.load %arg6[%c0_107, %c7_108, %c0_109] : memref<2x8x32xf32, #tpu.memory_space<vmem>>, vector<2x1x32xf32>
    %330 = vector.shape_cast %329 : vector<2x1x32xf32> to vector<2x32xf32>
    %331 = vector.shape_cast %328 : vector<2x32xf32> to vector<2x1x32xf32>
    tpu.vector_store %arg6[%c0_107, %c7_108, %c0_109], %331 {strides = array<i32>} : memref<2x8x32xf32, #tpu.memory_space<vmem>>, vector<2x1x32xf32>,
    %c0_110 = arith.constant 0 : index
    %c0_111 = arith.constant 0 : index
    %c0_112 = arith.constant 0 : index
    %332 = vector.load %arg6[%c0_110, %c0_111, %c0_112] : memref<2x8x32xf32, #tpu.memory_space<vmem>>, vector<2x8x32xf32>
    %333 = vector.shape_cast %332 : vector<2x8x32xf32> to vector<16x32xf32>
    %c448 = arith.constant 448 : index
    %c0_113 = arith.constant 0 : index
    %334 = vector.load %arg3[%c448, %c0_113] : memref<576x128xf32, #tpu.memory_space<vmem>>, vector<32x128xf32>
    %335 = vector.extract_strided_slice %334 {offsets = [0, 0], sizes = [32, 32], strides = [1, 1]} : vector<32x128xf32> to vector<32x32xf32>
    %cst_114 = arith.constant dense<0.000000e+00> : vector<16x32xf32>
    %336 = tpu.matmul %333, %335, %cst_114 {dimension_numbers = #tpu.dot_dimension_numbers<[1], [0], [0], [1], [0, 0, 1, 1], [], []>} : vector<16x32xf32>, vector<32x32xf32>, vector<16x32xf32> -> vector<16x32xf32>
    %c13 = arith.constant 13 : index
    %c0_115 = arith.constant 0 : index
    %337 = vector.load %arg4[%c13, %c0_115] : memref<17x128xf32, #tpu.memory_space<vmem>>, vector<1x128xf32>
    %338 = vector.extract_strided_slice %337 {offsets = [0, 0], sizes = [1, 32], strides = [1, 1]} : vector<1x128xf32> to vector<1x32xf32>
    %339 = vector.broadcast %338 : vector<1x32xf32> to vector<16x32xf32>
    %340 = arith.addf %336, %339 : vector<16x32xf32>
    %cst_116 = arith.constant 0.000000e+00 : f32
    %341 = vector.broadcast %cst_116 : f32 to vector<16x32xf32>
    %342 = arith.cmpf oge, %340, %341 : vector<16x32xf32>
    %cst_117 = arith.constant 2.000000e-01 : f32
    %343 = vector.broadcast %cst_117 : f32 to vector<16x32xf32>
    %344 = arith.mulf %343, %340 : vector<16x32xf32>
    %345 = arith.select %342, %340, %344 : vector<16x32xi1>, vector<16x32xf32>
    %c480 = arith.constant 480 : index
    %c0_118 = arith.constant 0 : index
    %346 = vector.load %arg3[%c480, %c0_118] : memref<576x128xf32, #tpu.memory_space<vmem>>, vector<32x128xf32>
    %347 = vector.extract_strided_slice %346 {offsets = [0, 0], sizes = [32, 32], strides = [1, 1]} : vector<32x128xf32> to vector<32x32xf32>
    %cst_119 = arith.constant dense<0.000000e+00> : vector<16x32xf32>
    %348 = tpu.matmul %345, %347, %cst_119 {dimension_numbers = #tpu.dot_dimension_numbers<[1], [0], [0], [1], [0, 0, 1, 1], [], []>} : vector<16x32xf32>, vector<32x32xf32>, vector<16x32xf32> -> vector<16x32xf32>
    %c14 = arith.constant 14 : index
    %c0_120 = arith.constant 0 : index
    %349 = vector.load %arg4[%c14, %c0_120] : memref<17x128xf32, #tpu.memory_space<vmem>>, vector<1x128xf32>
    %350 = vector.extract_strided_slice %349 {offsets = [0, 0], sizes = [1, 32], strides = [1, 1]} : vector<1x128xf32> to vector<1x32xf32>
    %351 = vector.broadcast %350 : vector<1x32xf32> to vector<16x32xf32>
    %352 = arith.addf %348, %351 : vector<16x32xf32>
    %cst_121 = arith.constant 0.000000e+00 : f32
    %353 = vector.broadcast %cst_121 : f32 to vector<16x32xf32>
    %354 = arith.cmpf oge, %352, %353 : vector<16x32xf32>
    %cst_122 = arith.constant 2.000000e-01 : f32
    %355 = vector.broadcast %cst_122 : f32 to vector<16x32xf32>
    %356 = arith.mulf %355, %352 : vector<16x32xf32>
    %357 = arith.select %354, %352, %356 : vector<16x32xi1>, vector<16x32xf32>
    %c512 = arith.constant 512 : index
    %c0_123 = arith.constant 0 : index
    %358 = vector.load %arg3[%c512, %c0_123] : memref<576x128xf32, #tpu.memory_space<vmem>>, vector<32x128xf32>
    %359 = vector.extract_strided_slice %358 {offsets = [0, 0], sizes = [32, 32], strides = [1, 1]} : vector<32x128xf32> to vector<32x32xf32>
    %cst_124 = arith.constant dense<0.000000e+00> : vector<16x32xf32>
    %360 = tpu.matmul %357, %359, %cst_124 {dimension_numbers = #tpu.dot_dimension_numbers<[1], [0], [0], [1], [0, 0, 1, 1], [], []>} : vector<16x32xf32>, vector<32x32xf32>, vector<16x32xf32> -> vector<16x32xf32>
    %c15 = arith.constant 15 : index
    %c0_125 = arith.constant 0 : index
    %361 = vector.load %arg4[%c15, %c0_125] : memref<17x128xf32, #tpu.memory_space<vmem>>, vector<1x128xf32>
    %362 = vector.extract_strided_slice %361 {offsets = [0, 0], sizes = [1, 32], strides = [1, 1]} : vector<1x128xf32> to vector<1x32xf32>
    %363 = vector.broadcast %362 : vector<1x32xf32> to vector<16x32xf32>
    %364 = arith.addf %360, %363 : vector<16x32xf32>
    %cst_126 = arith.constant 0.000000e+00 : f32
    %365 = vector.broadcast %cst_126 : f32 to vector<16x32xf32>
    %366 = arith.cmpf oge, %364, %365 : vector<16x32xf32>
    %cst_127 = arith.constant 2.000000e-01 : f32
    %367 = vector.broadcast %cst_127 : f32 to vector<16x32xf32>
    %368 = arith.mulf %367, %364 : vector<16x32xf32>
    %369 = arith.select %366, %364, %368 : vector<16x32xi1>, vector<16x32xf32>
    %c544 = arith.constant 544 : index
    %c0_128 = arith.constant 0 : index
    %370 = vector.load %arg3[%c544, %c0_128] : memref<576x128xf32, #tpu.memory_space<vmem>>, vector<32x128xf32>
    %371 = vector.extract_strided_slice %370 {offsets = [0, 0], sizes = [32, 7], strides = [1, 1]} : vector<32x128xf32> to vector<32x7xf32>
    %cst_129 = arith.constant dense<0.000000e+00> : vector<16x7xf32>
    %372 = tpu.matmul %369, %371, %cst_129 {dimension_numbers = #tpu.dot_dimension_numbers<[1], [0], [0], [1], [0, 0, 1, 1], [], []>} : vector<16x32xf32>, vector<32x7xf32>, vector<16x7xf32> -> vector<16x7xf32>
    %c16_130 = arith.constant 16 : index
    %c0_131 = arith.constant 0 : index
    %373 = vector.load %arg4[%c16_130, %c0_131] : memref<17x128xf32, #tpu.memory_space<vmem>>, vector<1x128xf32>
    %374 = vector.extract_strided_slice %373 {offsets = [0, 0], sizes = [1, 7], strides = [1, 1]} : vector<1x128xf32> to vector<1x7xf32>
    %375 = vector.broadcast %374 : vector<1x7xf32> to vector<16x7xf32>
    %376 = arith.addf %372, %375 : vector<16x7xf32>
    %c0_132 = arith.constant 0 : index
    %c0_133 = arith.constant 0 : index
    %377 = vector.load %arg5[%c0_132, %c0_133] : memref<16x7xf32, #tpu.memory_space<vmem>>, vector<16x7xf32>
    tpu.vector_store %arg5[%c0_132, %c0_133], %376 {strides = array<i32>} : memref<16x7xf32, #tpu.memory_space<vmem>>, vector<16x7xf32>,
    return
  }
  func.func @transform_0(%arg0: i32) -> (i32, i32, i32) {
    %c0_i32 = arith.constant 0 : i32
    %c0_i32_0 = arith.constant 0 : i32
    %c0_i32_1 = arith.constant 0 : i32
    %c0_i32_2 = arith.constant 0 : i32
    return %c0_i32, %c0_i32_0, %c0_i32_1 : i32, i32, i32
  }
  func.func @transform_1(%arg0: i32) -> (i32, i32, i32) {
    %c0_i32 = arith.constant 0 : i32
    %c0_i32_0 = arith.constant 0 : i32
    %c0_i32_1 = arith.constant 0 : i32
    %c0_i32_2 = arith.constant 0 : i32
    return %c0_i32, %c0_i32_0, %c0_i32_1 : i32, i32, i32
  }
  func.func @transform_2(%arg0: i32) -> (i32, i32) {
    %c0_i32 = arith.constant 0 : i32
    %c0_i32_0 = arith.constant 0 : i32
    %c0_i32_1 = arith.constant 0 : i32
    return %c0_i32, %c0_i32_0 : i32, i32
  }
  func.func @transform_3(%arg0: i32) -> (i32, i32) {
    %c0_i32 = arith.constant 0 : i32
    %c0_i32_0 = arith.constant 0 : i32
    %c0_i32_1 = arith.constant 0 : i32
    return %c0_i32, %c0_i32_0 : i32, i32
  }
  func.func @transform_4(%arg0: i32) -> (i32, i32) {
    %c0_i32 = arith.constant 0 : i32
    %c0_i32_0 = arith.constant 0 : i32
    %c0_i32_1 = arith.constant 0 : i32
    return %c0_i32, %c0_i32_0 : i32, i32
  }
}

</mosaic_0001>

<llo_original>
// kernel: forward.1
$region0: #{forward.1}
  #allocation0 [shape = 'u32[]', space=smem, size = 0x4, offset = 0x4, fixed_abs, tag = 'smem constant byte address 0x4 - core index']
  #allocation1 [shape = 'u32[72,128]{1,0:T(1,128)}', space=vmem, size = 0x9000, scoped, tag = 'internal scratch']
  #allocation2 [shape = 'f32[2,8,32]{2,1,0:T(8,128)}', space=vmem, size = 0x2000, scoped, tag = 'scratch operand']
  %s0 = inlined_call_operand.hbm [shape: f32[2,8,10], index: 0, kind: input, shape index: {}]
  %s1 = inlined_call_operand.hbm [shape: f32[2,8,10], index: 1, kind: input, shape index: {}]
  %s2 = inlined_call_operand.hbm [shape: f32[576,128], index: 2, kind: input, shape index: {}]
  %s3 = inlined_call_operand.hbm [shape: f32[17,128], index: 3, kind: input, shape index: {}]
  %s4 = inlined_call_operand.vmem [shape: f32[16,7], index: 4, kind: output, shape index: {}]
  %s5 = sld [smem:[#allocation0]]
  $region42: #{forward.1} parent=0
    _
  %s7 = ssub.s32 1, %s5
  %s8 = scalar_select 0, %s7, %s5
  $region1: #{forward.1} parent=0
    #allocation3 [shape = 'u8[8192]{0}', space=vmem, size = 0x2000, scoped, tag = 'input window, operand 0, single buffered']
    #allocation4 [shape = 's32[1]{0}', space=sflag, size = 0x4, scoped, tag = 'scoped memory for forward.1']
    #allocation5 [shape = 'u8[8192]{0}', space=vmem, size = 0x2000, scoped, tag = 'input window, operand 1, single buffered']
    #allocation6 [shape = 's32[1]{0}', space=sflag, size = 0x4, scoped, tag = 'scoped memory for forward.1']
    #allocation7 [shape = 'u8[294912]{0}', space=vmem, size = 0x48000, scoped, tag = 'input window, operand 2, single buffered']
    #allocation8 [shape = 'u8[12288]{0}', space=vmem, size = 0x3000, scoped, tag = 'input window, operand 3, single buffered']
    #allocation9 [shape = 's32[1]{0}', space=sflag, size = 0x4, scoped, tag = 'scoped memory for forward.1']
    %9 = vsyncpa [#allocation4], 0
    %10 = vsyncpa [#allocation6], 0
    %11 = vsyncpa [#allocation9], 0
    // Predicated region
    $region2: #{forward.1} parent=1 // pred_check
      _
    $region3: #{forward.1} parent=1 // pred_check_branch
      %13 = sbr.rel (0) target = $region5
    $region4: #{forward.1} parent=1 // pred_region
      %15 = vsyncadd [#allocation4], 0
      %s16 = sshll.u32 %s0, 4
      %s17 = int_to_ptr.hbm [resolvable:$true] %s16
      %s18 = sshll.u32 [#allocation3], 4
      %s19 = int_to_ptr.vmem [resolvable:$true] %s18
      %24 = dma.hbm_to_vmem [thread:$0]  %s17, 256, %s19, [#allocation4], 128, 128, 8
    $region5: #{forward.1} parent=1 // pred_fallthru
      _
    // Predicated region
    $region6: #{forward.1} parent=1 // pred_check
      _
    $region7: #{forward.1} parent=1 // pred_check_branch
      %26 = sbr.rel (0) target = $region9
    $region8: #{forward.1} parent=1 // pred_region
      %28 = vsyncadd [#allocation6], 0
      %s29 = sshll.u32 %s1, 4
      %s30 = int_to_ptr.hbm [resolvable:$true] %s29
      %s31 = sshll.u32 [#allocation5], 4
      %s32 = int_to_ptr.vmem [resolvable:$true] %s31
      %37 = dma.hbm_to_vmem [thread:$0]  %s30, 256, %s32, [#allocation6], 128, 128, 8
    $region9: #{forward.1} parent=1 // pred_fallthru
      _
    // Predicated region
    $region10: #{forward.1} parent=1 // pred_check
      _
    $region11: #{forward.1} parent=1 // pred_check_branch
      %39 = sbr.rel (0) target = $region13
    $region12: #{forward.1} parent=1 // pred_region
      %41 = vsyncadd [#allocation6], 0
      %s42 = sshll.u32 %s2, 4
      %s43 = int_to_ptr.hbm [resolvable:$true] %s42
      %s44 = sshll.u32 [#allocation7], 4
      %s45 = int_to_ptr.vmem [resolvable:$true] %s44
      %50 = dma.hbm_to_vmem [thread:$0]  %s43, 9216, %s45, [#allocation6], 128, 128, 8
    $region13: #{forward.1} parent=1 // pred_fallthru
      _
    // Predicated region
    $region14: #{forward.1} parent=1 // pred_check
      _
    $region15: #{forward.1} parent=1 // pred_check_branch
      %52 = sbr.rel (0) target = $region17
    $region16: #{forward.1} parent=1 // pred_region
      %54 = vsyncadd [#allocation9], 0
      %s55 = sshll.u32 %s3, 4
      %s56 = int_to_ptr.hbm [resolvable:$true] %s55
      %s57 = sshll.u32 [#allocation8], 4
      %s58 = int_to_ptr.vmem [resolvable:$true] %s57
      %63 = dma.hbm_to_vmem [thread:$0]  %s56, 384, %s58, [#allocation9], 128, 128, 8
    $region17: #{forward.1} parent=1 // pred_fallthru
      _
    // Predicated region
    $region18: #{forward.1} parent=1 // pred_check
      _
    $region19: #{forward.1} parent=1 // pred_check_branch
      %65 = sbr.rel (0) target = $region21
    $region20: #{forward.1} parent=1 // pred_region
      %67 = dma.done [#allocation4], 256
    $region21: #{forward.1} parent=1 // pred_fallthru
      _
    // Predicated region
    $region22: #{forward.1} parent=1 // pred_check
      _
    $region23: #{forward.1} parent=1 // pred_check_branch
      %69 = sbr.rel (0) target = $region25
    $region24: #{forward.1} parent=1 // pred_region
      %71 = dma.done [#allocation6], 256
    $region25: #{forward.1} parent=1 // pred_fallthru
      _
    // Predicated region
    $region26: #{forward.1} parent=1 // pred_check
      _
    $region27: #{forward.1} parent=1 // pred_check_branch
      %73 = sbr.rel (0) target = $region29
    $region28: #{forward.1} parent=1 // pred_region
      %75 = dma.done [#allocation6], 9216
    $region29: #{forward.1} parent=1 // pred_fallthru
      _
    // Predicated region
    $region30: #{forward.1} parent=1 // pred_check
      _
    $region31: #{forward.1} parent=1 // pred_check_branch
      %77 = sbr.rel (0) target = $region33
    $region32: #{forward.1} parent=1 // pred_region
      %79 = dma.done [#allocation9], 384
    $region33: #{forward.1} parent=1 // pred_fallthru
      _
    %v80 = vld [vmem:[#allocation3] sm:$0xff]
    %v81 = vld [vmem:[#allocation3 + $0x8] sm:$0xff]
    %v82 = vld [vmem:[#allocation7] sm:$0xff]
    %v83 = vld [vmem:[#allocation7 + $0x8] sm:$0x3]
    %v84 = vld [vmem:[#allocation8] sm:$0x1]
    %v85 = vperm.slane %v84, 0
    %vm86 = vcmask 80896
    %v88 = vsel %vm86, %v80, 0
    %v91 = vsel %vm86, %v81, 0
    %vm93 = vcmask 1041408
    %v95 = vsel %vm93, %v83, 0
    %97 = vmatpush.msra.mxu0 0.0
    %98 = vmatpush.msra.mxu0 0.0
    %99 = vmatpush.msra.mxu0 0.0
    %100 = vmatpush.msra.mxu0 0.0
    %101 = vmatpush.msra.mxu0 0.0
    %102 = vmatpush.msra.mxu0 0.0
    %103 = vmatpush.msra.mxu0 0.0
    %104 = vmatpush.msra.mxu0 0.0
    %105 = vmatpush.msra.mxu0 0.0
    %106 = vmatpush.msra.mxu0 0.0
    %107 = vmatpush.msra.mxu0 0.0
    %108 = vmatpush.msra.mxu0 0.0
    %109 = vmatpush.msra.mxu0 0.0
    %110 = vmatpush.msra.mxu0 0.0
    %111 = vmatpush.msra.mxu0 %v95
    %112 = vmatpush.msra.mxu0 %v82
    %113 = vmatmul.f32.gmra.mxu0 %v88
    %v114 = vpop.f32.mrf.mxu0
    %v115 = vadd.f32 %v85, %v114
    %116 = vmatmul.f32.gmra.mxu0 %v91
    %v117 = vpop.f32.mrf.mxu0
    %v118 = vadd.f32 %v85, %v117
    %119 = vdwg.mxu0
    %vm120 = vcmp.ge.f32.partialorder %v115, 0.0
    %vm121 = vcmp.ge.f32.partialorder %v118, 0.0
    %v122 = vmul.f32 %v115, 0.2
    %v123 = vmul.f32 %v118, 0.2
    %v124 = vsel %vm120, %v115, %v122
    %v125 = vsel %vm121, %v118, %v123
    %v126 = vld [vmem:[#allocation7 + $0x10] sm:$0xff]
    %v127 = vld [vmem:[#allocation7 + $0x18] sm:$0xff]
    %v128 = vld [vmem:[#allocation7 + $0x20] sm:$0xff]
    %v129 = vld [vmem:[#allocation7 + $0x28] sm:$0xff]
    %v130 = vld [vmem:[#allocation8 + $0x1] sm:$0x1]
    %v131 = vperm.slane %v130, 0
    %vm132 = vcmask 261120
    %v134 = vsel %vm132, %v124, 0
    %v137 = vsel %vm132, %v125, 0
    %139 = vmatpush.msra.mxu0 0.0
    %140 = vmatpush.msra.mxu0 0.0
    %141 = vmatpush.msra.mxu0 0.0
    %142 = vmatpush.msra.mxu0 0.0
    %143 = vmatpush.msra.mxu0 0.0
    %144 = vmatpush.msra.mxu0 0.0
    %145 = vmatpush.msra.mxu0 0.0
    %146 = vmatpush.msra.mxu0 0.0
    %147 = vmatpush.msra.mxu0 0.0
    %148 = vmatpush.msra.mxu0 0.0
    %149 = vmatpush.msra.mxu0 0.0
    %150 = vmatpush.msra.mxu0 0.0
    %151 = vmatpush.msra.mxu0 %v129
    %152 = vmatpush.msra.mxu0 %v128
    %153 = vmatpush.msra.mxu0 %v127
    %154 = vmatpush.msra.mxu0 %v126
    %155 = vmatmul.f32.gmra.mxu0 %v134
    %v156 = vpop.f32.mrf.mxu0
    %v157 = vadd.f32 %v131, %v156
    %158 = vmatmul.f32.gmra.mxu0 %v137
    %v159 = vpop.f32.mrf.mxu0
    %v160 = vadd.f32 %v131, %v159
    %161 = vdwg.mxu0
    %vm162 = vcmp.ge.f32.partialorder %v157, 0.0
    %vm163 = vcmp.ge.f32.partialorder %v160, 0.0
    %v164 = vmul.f32 %v157, 0.2
    %v165 = vmul.f32 %v160, 0.2
    %v166 = vsel %vm162, %v157, %v164
    %v167 = vsel %vm163, %v160, %v165
    %v168 = vld [vmem:[#allocation7 + $0x30] sm:$0xff]
    %v169 = vld [vmem:[#allocation7 + $0x38] sm:$0xff]
    %v170 = vld [vmem:[#allocation7 + $0x40] sm:$0xff]
    %v171 = vld [vmem:[#allocation7 + $0x48] sm:$0xff]
    %v172 = vld [vmem:[#allocation8 + $0x2] sm:$0x1]
    %v173 = vperm.slane %v172, 0
    %v175 = vsel %vm132, %v166, 0
    %v178 = vsel %vm132, %v167, 0
    %180 = vmatpush.msra.mxu0 0.0
    %181 = vmatpush.msra.mxu0 0.0
    %182 = vmatpush.msra.mxu0 0.0
    %183 = vmatpush.msra.mxu0 0.0
    %184 = vmatpush.msra.mxu0 0.0
    %185 = vmatpush.msra.mxu0 0.0
    %186 = vmatpush.msra.mxu0 0.0
    %187 = vmatpush.msra.mxu0 0.0
    %188 = vmatpush.msra.mxu0 0.0
    %189 = vmatpush.msra.mxu0 0.0
    %190 = vmatpush.msra.mxu0 0.0
    %191 = vmatpush.msra.mxu0 0.0
    %192 = vmatpush.msra.mxu0 %v171
    %193 = vmatpush.msra.mxu0 %v170
    %194 = vmatpush.msra.mxu0 %v169
    %195 = vmatpush.msra.mxu0 %v168
    %196 = vmatmul.f32.gmra.mxu0 %v175
    %v197 = vpop.f32.mrf.mxu0
    %v198 = vadd.f32 %v173, %v197
    %199 = vmatmul.f32.gmra.mxu0 %v178
    %v200 = vpop.f32.mrf.mxu0
    %v201 = vadd.f32 %v173, %v200
    %202 = vdwg.mxu0
    %vm203 = vcmp.ge.f32.partialorder %v198, 0.0
    %vm204 = vcmp.ge.f32.partialorder %v201, 0.0
    %v205 = vmul.f32 %v198, 0.2
    %v206 = vmul.f32 %v201, 0.2
    %v207 = vsel %vm203, %v198, %v205
    %v208 = vsel %vm204, %v201, %v206
    %v209 = vld [vmem:[#allocation7 + $0x50] sm:$0xff]
    %v210 = vld [vmem:[#allocation7 + $0x58] sm:$0xff]
    %v211 = vld [vmem:[#allocation7 + $0x60] sm:$0xff]
    %v212 = vld [vmem:[#allocation7 + $0x68] sm:$0xff]
    %v213 = vld [vmem:[#allocation8 + $0x3] sm:$0x1]
    %v214 = vperm.slane %v213, 0
    %v216 = vsel %vm132, %v207, 0
    %v219 = vsel %vm132, %v208, 0
    %221 = vmatpush.msra.mxu0 0.0
    %222 = vmatpush.msra.mxu0 0.0
    %223 = vmatpush.msra.mxu0 0.0
    %224 = vmatpush.msra.mxu0 0.0
    %225 = vmatpush.msra.mxu0 0.0
    %226 = vmatpush.msra.mxu0 0.0
    %227 = vmatpush.msra.mxu0 0.0
    %228 = vmatpush.msra.mxu0 0.0
    %229 = vmatpush.msra.mxu0 0.0
    %230 = vmatpush.msra.mxu0 0.0
    %231 = vmatpush.msra.mxu0 0.0
    %232 = vmatpush.msra.mxu0 0.0
    %233 = vmatpush.msra.mxu0 %v212
    %234 = vmatpush.msra.mxu0 %v211
    %235 = vmatpush.msra.mxu0 %v210
    %236 = vmatpush.msra.mxu0 %v209
    %237 = vmatmul.f32.gmra.mxu0 %v216
    %v238 = vpop.f32.mrf.mxu0
    %v239 = vadd.f32 %v214, %v238
    %240 = vmatmul.f32.gmra.mxu0 %v219
    %v241 = vpop.f32.mrf.mxu0
    %v242 = vadd.f32 %v214, %v241
    %243 = vdwg.mxu0
    %v244 = vld [vmem:[#allocation5] sm:$0xff]
    %v245 = vld [vmem:[#allocation5 + $0x8] sm:$0xff]
    %v246 = vld [vmem:[#allocation7 + $0x70] sm:$0xff]
    %v247 = vld [vmem:[#allocation7 + $0x78] sm:$0x3]
    %v248 = vld [vmem:[#allocation8 + $0x4] sm:$0x1]
    %v249 = vperm.slane %v248, 0
    %v252 = vrot.slane %v245, 7
    %vm253 = vcmask 1041409
    %v254 = vsel %vm253, %v252, %v244
    %v255 = vsel %vm86, %v254, 0
    %v258 = vsel %vm93, %v247, 0
    %260 = vmatpush.msra.mxu0 0.0
    %261 = vmatpush.msra.mxu0 0.0
    %262 = vmatpush.msra.mxu0 0.0
    %263 = vmatpush.msra.mxu0 0.0
    %264 = vmatpush.msra.mxu0 0.0
    %265 = vmatpush.msra.mxu0 0.0
    %266 = vmatpush.msra.mxu0 0.0
    %267 = vmatpush.msra.mxu0 0.0
    %268 = vmatpush.msra.mxu0 0.0
    %269 = vmatpush.msra.mxu0 0.0
    %270 = vmatpush.msra.mxu0 0.0
    %271 = vmatpush.msra.mxu0 0.0
    %272 = vmatpush.msra.mxu0 0.0
    %273 = vmatpush.msra.mxu0 0.0
    %274 = vmatpush.msra.mxu0 %v258
    %275 = vmatpush.msra.mxu0 %v246
    %276 = vmatmul.f32.gmra.mxu0 %v255
    %v277 = vpop.f32.mrf.mxu0
    %v278 = vadd.f32 %v249, %v277
    %279 = vdwg.mxu0
    %vm280 = vcmp.ge.f32.partialorder %v278, 0.0
    %v281 = vmul.f32 %v278, 0.2
    %v282 = vsel %vm280, %v278, %v281
    %v283 = vld [vmem:[#allocation7 + $0x80] sm:$0xff]
    %v284 = vld [vmem:[#allocation7 + $0x88] sm:$0xff]
    %v285 = vld [vmem:[#allocation7 + $0x90] sm:$0xff]
    %v286 = vld [vmem:[#allocation7 + $0x98] sm:$0xff]
    %v287 = vld [vmem:[#allocation8 + $0x5] sm:$0x1]
    %v288 = vperm.slane %v287, 0
    %v290 = vsel %vm132, %v282, 0
    %292 = vmatpush.msra.mxu0 0.0
    %293 = vmatpush.msra.mxu0 0.0
    %294 = vmatpush.msra.mxu0 0.0
    %295 = vmatpush.msra.mxu0 0.0
    %296 = vmatpush.msra.mxu0 0.0
    %297 = vmatpush.msra.mxu0 0.0
    %298 = vmatpush.msra.mxu0 0.0
    %299 = vmatpush.msra.mxu0 0.0
    %300 = vmatpush.msra.mxu0 0.0
    %301 = vmatpush.msra.mxu0 0.0
    %302 = vmatpush.msra.mxu0 0.0
    %303 = vmatpush.msra.mxu0 0.0
    %304 = vmatpush.msra.mxu0 %v286
    %305 = vmatpush.msra.mxu0 %v285
    %306 = vmatpush.msra.mxu0 %v284
    %307 = vmatpush.msra.mxu0 %v283
    %308 = vmatmul.f32.gmra.mxu0 %v290
    %v309 = vpop.f32.mrf.mxu0
    %v310 = vadd.f32 %v288, %v309
    %311 = vdwg.mxu0
    %vm312 = vcmp.ge.f32.partialorder %v310, 0.0
    %v313 = vmul.f32 %v310, 0.2
    %v314 = vsel %vm312, %v310, %v313
    %v315 = vld [vmem:[#allocation7 + $0xa0] sm:$0xff]
    %v316 = vld [vmem:[#allocation7 + $0xa8] sm:$0xff]
    %v317 = vld [vmem:[#allocation7 + $0xb0] sm:$0xff]
    %v318 = vld [vmem:[#allocation7 + $0xb8] sm:$0xff]
    %v319 = vld [vmem:[#allocation8 + $0x6] sm:$0x1]
    %v320 = vperm.slane %v319, 0
    %v322 = vsel %vm132, %v314, 0
    %324 = vmatpush.msra.mxu0 0.0
    %325 = vmatpush.msra.mxu0 0.0
    %326 = vmatpush.msra.mxu0 0.0
    %327 = vmatpush.msra.mxu0 0.0
    %328 = vmatpush.msra.mxu0 0.0
    %329 = vmatpush.msra.mxu0 0.0
    %330 = vmatpush.msra.mxu0 0.0
    %331 = vmatpush.msra.mxu0 0.0
    %332 = vmatpush.msra.mxu0 0.0
    %333 = vmatpush.msra.mxu0 0.0
    %334 = vmatpush.msra.mxu0 0.0
    %335 = vmatpush.msra.mxu0 0.0
    %336 = vmatpush.msra.mxu0 %v318
    %337 = vmatpush.msra.mxu0 %v317
    %338 = vmatpush.msra.mxu0 %v316
    %339 = vmatpush.msra.mxu0 %v315
    %340 = vmatmul.f32.gmra.mxu0 %v322
    %v341 = vpop.f32.mrf.mxu0
    %v342 = vadd.f32 %v320, %v341
    %343 = vdwg.mxu0
    %vm344 = vcmp.ge.f32.partialorder %v342, 0.0
    %v345 = vmul.f32 %v342, 0.2
    %v346 = vsel %vm344, %v342, %v345
    %v347 = vld [vmem:[#allocation7 + $0xc0] sm:$0xff]
    %v348 = vld [vmem:[#allocation7 + $0xc8] sm:$0xff]
    %v349 = vld [vmem:[#allocation7 + $0xd0] sm:$0xff]
    %v350 = vld [vmem:[#allocation7 + $0xd8] sm:$0xff]
    %v351 = vld [vmem:[#allocation8 + $0x7] sm:$0x1]
    %v352 = vperm.slane %v351, 0
    %v354 = vsel %vm132, %v346, 0
    %356 = vmatpush.msra.mxu0 0.0
    %357 = vmatpush.msra.mxu0 0.0
    %358 = vmatpush.msra.mxu0 0.0
    %359 = vmatpush.msra.mxu0 0.0
    %360 = vmatpush.msra.mxu0 0.0
    %361 = vmatpush.msra.mxu0 0.0
    %362 = vmatpush.msra.mxu0 0.0
    %363 = vmatpush.msra.mxu0 0.0
    %364 = vmatpush.msra.mxu0 0.0
    %365 = vmatpush.msra.mxu0 0.0
    %366 = vmatpush.msra.mxu0 0.0
    %367 = vmatpush.msra.mxu0 0.0
    %368 = vmatpush.msra.mxu0 %v350
    %369 = vmatpush.msra.mxu0 %v349
    %370 = vmatpush.msra.mxu0 %v348
    %371 = vmatpush.msra.mxu0 %v347
    %372 = vmatmul.f32.gmra.mxu0 %v354
    %v373 = vpop.f32.mrf.mxu0
    %v374 = vadd.f32 %v352, %v373
    %375 = vdwg.mxu0
    %v376 = vld [vmem:[#allocation7 + $0xe0] sm:$0xff]
    %v377 = vld [vmem:[#allocation7 + $0xe8] sm:$0xff]
    %v378 = vld [vmem:[#allocation7 + $0xf0] sm:$0xff]
    %v379 = vld [vmem:[#allocation7 + $0xf8] sm:$0xff]
    %v380 = vld [vmem:[#allocation7 + $0x100] sm:$0xff]
    %v381 = vld [vmem:[#allocation7 + $0x108] sm:$0xff]
    %v382 = vld [vmem:[#allocation7 + $0x110] sm:$0xff]
    %v383 = vld [vmem:[#allocation7 + $0x118] sm:$0xff]
    %v384 = vld [vmem:[#allocation8 + $0x8] sm:$0x1]
    %v385 = vperm.slane %v384, 0
    %v387 = vsel %vm132, %v374, 0
    %389 = vmatpush.msra.mxu0 0.0
    %390 = vmatpush.msra.mxu0 0.0
    %391 = vmatpush.msra.mxu0 0.0
    %392 = vmatpush.msra.mxu0 0.0
    %393 = vmatpush.msra.mxu0 0.0
    %394 = vmatpush.msra.mxu0 0.0
    %395 = vmatpush.msra.mxu0 0.0
    %396 = vmatpush.msra.mxu0 0.0
    %397 = vmatpush.msra.mxu0 0.0
    %398 = vmatpush.msra.mxu0 0.0
    %399 = vmatpush.msra.mxu0 0.0
    %400 = vmatpush.msra.mxu0 0.0
    %401 = vmatpush.msra.mxu0 %v383
    %402 = vmatpush.msra.mxu0 %v382
    %403 = vmatpush.msra.mxu0 %v381
    %404 = vmatpush.msra.mxu0 %v380
    %405 = vmatmul.f32.gmra.mxu0 %v387
    %v406 = vpop.f32.mrf.mxu0
    %v407 = vadd.f32 %v385, %v406
    %408 = vdwg.mxu0
    %v410 = vsel %vm132, %v239, 0
    %v413 = vsel %vm132, %v242, 0
    %415 = vmatpush.msra.mxu0 0.0
    %416 = vmatpush.msra.mxu0 0.0
    %417 = vmatpush.msra.mxu0 0.0
    %418 = vmatpush.msra.mxu0 0.0
    %419 = vmatpush.msra.mxu0 0.0
    %420 = vmatpush.msra.mxu0 0.0
    %421 = vmatpush.msra.mxu0 0.0
    %422 = vmatpush.msra.mxu0 0.0
    %423 = vmatpush.msra.mxu0 0.0
    %424 = vmatpush.msra.mxu0 0.0
    %425 = vmatpush.msra.mxu0 0.0
    %426 = vmatpush.msra.mxu0 0.0
    %427 = vmatpush.msra.mxu0 %v379
    %428 = vmatpush.msra.mxu0 %v378
    %429 = vmatpush.msra.mxu0 %v377
    %430 = vmatpush.msra.mxu0 %v376
    %431 = vmatmul.f32.gmra.mxu0 %v410
    %v432 = vpop.f32.mrf.mxu0
    %v433 = vadd.f32 0.0, %v432
    %434 = vmatmul.f32.gmra.mxu0 %v413
    %v435 = vpop.f32.mrf.mxu0
    %v436 = vadd.f32 0.0, %v435
    %437 = vdwg.mxu0
    %v439 = vrot.slane %v407, 1
    %v440 = vperm.slane %v407, 0
    %v441 = vperm.slane %v439, 0
    %v444 = vadd.f32 %v433, %v440
    %v445 = vadd.f32 %v436, %v441
    %vm446 = vcmp.ge.f32.partialorder %v444, 0.0
    %vm447 = vcmp.ge.f32.partialorder %v445, 0.0
    %v448 = vmul.f32 %v444, 0.2
    %v449 = vmul.f32 %v445, 0.2
    %v450 = vsel %vm446, %v444, %v448
    %v451 = vsel %vm447, %v445, %v449
    %v452 = vld [vmem:[#allocation7 + $0x120] sm:$0xff]
    %v453 = vld [vmem:[#allocation7 + $0x128] sm:$0xff]
    %v454 = vld [vmem:[#allocation7 + $0x130] sm:$0xff]
    %v455 = vld [vmem:[#allocation7 + $0x138] sm:$0xff]
    %v456 = vld [vmem:[#allocation8 + $0x9] sm:$0x1]
    %v457 = vperm.slane %v456, 0
    %v459 = vsel %vm132, %v450, 0
    %v462 = vsel %vm132, %v451, 0
    %464 = vmatpush.msra.mxu0 0.0
    %465 = vmatpush.msra.mxu0 0.0
    %466 = vmatpush.msra.mxu0 0.0
    %467 = vmatpush.msra.mxu0 0.0
    %468 = vmatpush.msra.mxu0 0.0
    %469 = vmatpush.msra.mxu0 0.0
    %470 = vmatpush.msra.mxu0 0.0
    %471 = vmatpush.msra.mxu0 0.0
    %472 = vmatpush.msra.mxu0 0.0
    %473 = vmatpush.msra.mxu0 0.0
    %474 = vmatpush.msra.mxu0 0.0
    %475 = vmatpush.msra.mxu0 0.0
    %476 = vmatpush.msra.mxu0 %v455
    %477 = vmatpush.msra.mxu0 %v454
    %478 = vmatpush.msra.mxu0 %v453
    %479 = vmatpush.msra.mxu0 %v452
    %480 = vmatmul.f32.gmra.mxu0 %v459
    %v481 = vpop.f32.mrf.mxu0
    %v482 = vadd.f32 %v457, %v481
    %483 = vmatmul.f32.gmra.mxu0 %v462
    %v484 = vpop.f32.mrf.mxu0
    %v485 = vadd.f32 %v457, %v484
    %486 = vdwg.mxu0
    %vm487 = vcmp.ge.f32.partialorder %v482, 0.0
    %vm488 = vcmp.ge.f32.partialorder %v485, 0.0
    %v489 = vmul.f32 %v482, 0.2
    %v490 = vmul.f32 %v485, 0.2
    %v491 = vsel %vm487, %v482, %v489
    %v492 = vsel %vm488, %v485, %v490
    %v493 = vld [vmem:[#allocation7 + $0x140] sm:$0xff]
    %v494 = vld [vmem:[#allocation7 + $0x148] sm:$0xff]
    %v495 = vld [vmem:[#allocation7 + $0x150] sm:$0xff]
    %v496 = vld [vmem:[#allocation7 + $0x158] sm:$0xff]
    %v497 = vld [vmem:[#allocation8 + $0xa] sm:$0x1]
    %v498 = vperm.slane %v497, 0
    %v500 = vsel %vm132, %v491, 0
    %v503 = vsel %vm132, %v492, 0
    %505 = vmatpush.msra.mxu0 0.0
    %506 = vmatpush.msra.mxu0 0.0
    %507 = vmatpush.msra.mxu0 0.0
    %508 = vmatpush.msra.mxu0 0.0
    %509 = vmatpush.msra.mxu0 0.0
    %510 = vmatpush.msra.mxu0 0.0
    %511 = vmatpush.msra.mxu0 0.0
    %512 = vmatpush.msra.mxu0 0.0
    %513 = vmatpush.msra.mxu0 0.0
    %514 = vmatpush.msra.mxu0 0.0
    %515 = vmatpush.msra.mxu0 0.0
    %516 = vmatpush.msra.mxu0 0.0
    %517 = vmatpush.msra.mxu0 %v496
    %518 = vmatpush.msra.mxu0 %v495
    %519 = vmatpush.msra.mxu0 %v494
    %520 = vmatpush.msra.mxu0 %v493
    %521 = vmatmul.f32.gmra.mxu0 %v500
    %v522 = vpop.f32.mrf.mxu0
    %v523 = vadd.f32 %v498, %v522
    %524 = vmatmul.f32.gmra.mxu0 %v503
    %v525 = vpop.f32.mrf.mxu0
    %v526 = vadd.f32 %v498, %v525
    %527 = vdwg.mxu0
    %vm528 = vcmp.ge.f32.partialorder %v523, 0.0
    %vm529 = vcmp.ge.f32.partialorder %v526, 0.0
    %v530 = vmul.f32 %v523, 0.2
    %v531 = vmul.f32 %v526, 0.2
    %v532 = vsel %vm528, %v523, %v530
    %v533 = vsel %vm529, %v526, %v531
    %v534 = vld [vmem:[#allocation7 + $0x160] sm:$0xff]
    %v535 = vld [vmem:[#allocation7 + $0x168] sm:$0xff]
    %v536 = vld [vmem:[#allocation7 + $0x170] sm:$0xff]
    %v537 = vld [vmem:[#allocation7 + $0x178] sm:$0xff]
    %v538 = vld [vmem:[#allocation8 + $0xb] sm:$0x1]
    %v539 = vperm.slane %v538, 0
    %v541 = vsel %vm132, %v532, 0
    %v544 = vsel %vm132, %v533, 0
    %546 = vmatpush.msra.mxu0 0.0
    %547 = vmatpush.msra.mxu0 0.0
    %548 = vmatpush.msra.mxu0 0.0
    %549 = vmatpush.msra.mxu0 0.0
    %550 = vmatpush.msra.mxu0 0.0
    %551 = vmatpush.msra.mxu0 0.0
    %552 = vmatpush.msra.mxu0 0.0
    %553 = vmatpush.msra.mxu0 0.0
    %554 = vmatpush.msra.mxu0 0.0
    %555 = vmatpush.msra.mxu0 0.0
    %556 = vmatpush.msra.mxu0 0.0
    %557 = vmatpush.msra.mxu0 0.0
    %558 = vmatpush.msra.mxu0 %v537
    %559 = vmatpush.msra.mxu0 %v536
    %560 = vmatpush.msra.mxu0 %v535
    %561 = vmatpush.msra.mxu0 %v534
    %562 = vmatmul.f32.gmra.mxu0 %v541
    %v563 = vpop.f32.mrf.mxu0
    %v564 = vadd.f32 %v539, %v563
    %565 = vmatmul.f32.gmra.mxu0 %v544
    %v566 = vpop.f32.mrf.mxu0
    %v567 = vadd.f32 %v539, %v566
    %568 = vdwg.mxu0
    %vm569 = vcmp.ge.f32.partialorder %v564, 0.0
    %vm570 = vcmp.ge.f32.partialorder %v567, 0.0
    %v571 = vmul.f32 %v564, 0.2
    %v572 = vmul.f32 %v567, 0.2
    %v573 = vsel %vm569, %v564, %v571
    %v574 = vsel %vm570, %v567, %v572
    %v575 = vld [vmem:[#allocation7 + $0x180] sm:$0xff]
    %v576 = vld [vmem:[#allocation7 + $0x188] sm:$0xff]
    %v577 = vld [vmem:[#allocation7 + $0x190] sm:$0xff]
    %v578 = vld [vmem:[#allocation7 + $0x198] sm:$0xff]
    %v579 = vld [vmem:[#allocation7 + $0x1a0] sm:$0xff]
    %v580 = vld [vmem:[#allocation7 + $0x1a8] sm:$0xff]
    %v581 = vld [vmem:[#allocation7 + $0x1b0] sm:$0xff]
    %v582 = vld [vmem:[#allocation7 + $0x1b8] sm:$0xff]
    %v583 = vld [vmem:[#allocation8 + $0xc] sm:$0x1]
    %v584 = vperm.slane %v583, 0
    %v586 = vsel %vm132, %v573, 0
    %v589 = vsel %vm132, %v574, 0
    %591 = vmatpush.msra.mxu0 0.0
    %592 = vmatpush.msra.mxu0 0.0
    %593 = vmatpush.msra.mxu0 0.0
    %594 = vmatpush.msra.mxu0 0.0
    %595 = vmatpush.msra.mxu0 0.0
    %596 = vmatpush.msra.mxu0 0.0
    %597 = vmatpush.msra.mxu0 0.0
    %598 = vmatpush.msra.mxu0 0.0
    %599 = vmatpush.msra.mxu0 0.0
    %600 = vmatpush.msra.mxu0 0.0
    %601 = vmatpush.msra.mxu0 0.0
    %602 = vmatpush.msra.mxu0 0.0
    %603 = vmatpush.msra.mxu0 %v578
    %604 = vmatpush.msra.mxu0 %v577
    %605 = vmatpush.msra.mxu0 %v576
    %606 = vmatpush.msra.mxu0 %v575
    %607 = vmatmul.f32.gmra.mxu0 %v586
    %v608 = vpop.f32.mrf.mxu0
    %v609 = vadd.f32 %v584, %v608
    %610 = vmatmul.f32.gmra.mxu0 %v589
    %v611 = vpop.f32.mrf.mxu0
    %v612 = vadd.f32 %v584, %v611
    %613 = vdwg.mxu0
    %v615 = vsel %vm132, 0.0, 0
    %617 = vmatpush.msra.mxu0 0.0
    %618 = vmatpush.msra.mxu0 0.0
    %619 = vmatpush.msra.mxu0 0.0
    %620 = vmatpush.msra.mxu0 0.0
    %621 = vmatpush.msra.mxu0 0.0
    %622 = vmatpush.msra.mxu0 0.0
    %623 = vmatpush.msra.mxu0 0.0
    %624 = vmatpush.msra.mxu0 0.0
    %625 = vmatpush.msra.mxu0 0.0
    %626 = vmatpush.msra.mxu0 0.0
    %627 = vmatpush.msra.mxu0 0.0
    %628 = vmatpush.msra.mxu0 0.0
    %629 = vmatpush.msra.mxu0 %v582
    %630 = vmatpush.msra.mxu0 %v581
    %631 = vmatpush.msra.mxu0 %v580
    %632 = vmatpush.msra.mxu0 %v579
    %633 = vmatmul.f32.gmra.mxu0 %v615
    %v634 = vpop.f32.mrf.mxu0
    %v635 = vadd.f32 0.0, %v634
    %636 = vdwg.mxu0
    %v638 = vrot.slane %v635, 1
    %v641 = vadd.f32 %v609, %v635
    %v642 = vadd.f32 %v612, %v638
    %v643 = vxor.u32 %v641, 2147483648
    %v644 = vxor.u32 %v642, 2147483648
    %v645 = vmul.f32 %v643, 1.442695
    %v646 = vpow.pop %v645
    %v647 = vmul.f32 %v644, 1.442695
    %v648 = vpow.pop %v647
    %v649 = vadd.f32 %v646, 1.0
    %v650 = vadd.f32 %v648, 1.0
    %v651 = vrcp.pop %v649
    %v652 = vmul.f32 %v649, %v651
    %v653 = vsub.f32 1.0, %v652
    %v654 = vmul.f32 %v651, %v653
    %v655 = vadd.f32 %v651, %v654
    %vm656 = vweird.f32 %v649
    %vm657 = vweird.f32 %v651
    %vm658 = vmor %vm656, %vm657
    %v659 = vsel %vm658, %v651, %v655
    %v660 = vand.u32 2147483647, %v649
    %vm661 = vcmp.eq.f32.partialorder %v660, 8.507059e+37
    %v662 = vand.u32 %v649, 2147483648
    %v663 = vor.u32 1.1754944e-38, %v662
    %v664 = vsel %vm661, %v663, %v659
    %v665 = vmul.f32 1.0, %v664
    %v666 = vrcp.pop %v650
    %v667 = vmul.f32 %v650, %v666
    %v668 = vsub.f32 1.0, %v667
    %v669 = vmul.f32 %v666, %v668
    %v670 = vadd.f32 %v666, %v669
    %vm671 = vweird.f32 %v650
    %vm672 = vweird.f32 %v666
    %vm673 = vmor %vm671, %vm672
    %v674 = vsel %vm673, %v666, %v670
    %v675 = vand.u32 2147483647, %v650
    %vm676 = vcmp.eq.f32.partialorder %v675, 8.507059e+37
    %v677 = vand.u32 %v650, 2147483648
    %v678 = vor.u32 1.1754944e-38, %v677
    %v679 = vsel %vm676, %v678, %v674
    %v680 = vmul.f32 1.0, %v679
    %v681 = vtanh.pop %v641
    %v682 = vtanh.pop %v642
    %v683 = vmul.f32 %v665, 0.0
    %v684 = vmul.f32 %v680, 0.0
    %687 = vrot.lane.b32.xlu0 %v681, 64
    %v688 = vpop.permute.xlu0 %687
    %689 = vrot.lane.b32.xlu0 %v682, 64
    %v690 = vpop.permute.xlu0 %689
    %v693 = vmul.f32 %v665, %v688
    %v694 = vmul.f32 %v680, %v690
    %697 = vrot.lane.b32.xlu0 %v693, 32
    %v698 = vpop.permute.xlu0 %697
    %699 = vrot.lane.b32.xlu0 %v694, 32
    %v700 = vpop.permute.xlu0 %699
    %v703 = vadd.f32 %v683, %v698
    %v704 = vadd.f32 %v684, %v700
    %v705 = vtanh.pop %v703
    %v706 = vtanh.pop %v704
    %709 = vrot.lane.b32.xlu0 %v705, 64
    %v710 = vpop.permute.xlu0 %709
    %711 = vrot.lane.b32.xlu0 %v706, 64
    %v712 = vpop.permute.xlu0 %711
    %v715 = vmul.f32 %v665, %v710
    %v716 = vmul.f32 %v680, %v712
    %719 = vrot.lane.b32.xlu0 %v715, 32
    %v720 = vpop.permute.xlu0 %719
    %721 = vrot.lane.b32.xlu0 %v716, 32
    %v722 = vpop.permute.xlu0 %721
    %vm725 = vcmask 253952
    %726 = vst.msk [vmem:[#allocation2] sm:$0x1] %vm725, %v720
    %727 = vst.msk [vmem:[#allocation2 + $0x8] sm:$0x1] %vm725, %v722
    %v728 = vrot.slane %v716, 7
    %v729 = vsel %vm253, %v728, %v715
    %730 = vrot.lane.b32.xlu0 %v729, 32
    %v731 = vpop.permute.xlu0 %730
    %v732 = vsel %vm132, %v731, 0
    %734 = vmatpush.msra.mxu0 0.0
    %735 = vmatpush.msra.mxu0 0.0
    %736 = vmatpush.msra.mxu0 0.0
    %737 = vmatpush.msra.mxu0 0.0
    %738 = vmatpush.msra.mxu0 0.0
    %739 = vmatpush.msra.mxu0 0.0
    %740 = vmatpush.msra.mxu0 0.0
    %741 = vmatpush.msra.mxu0 0.0
    %742 = vmatpush.msra.mxu0 0.0
    %743 = vmatpush.msra.mxu0 0.0
    %744 = vmatpush.msra.mxu0 0.0
    %745 = vmatpush.msra.mxu0 0.0
    %746 = vmatpush.msra.mxu0 %v582
    %747 = vmatpush.msra.mxu0 %v581
    %748 = vmatpush.msra.mxu0 %v580
    %749 = vmatpush.msra.mxu0 %v579
    %750 = vmatmul.f32.gmra.mxu0 %v732
    %v751 = vpop.f32.mrf.mxu0
    %v752 = vadd.f32 0.0, %v751
    %753 = vdwg.mxu0
    %v755 = vrot.slane %v752, 7
    %v758 = vadd.f32 %v609, %v755
    %v759 = vadd.f32 %v612, %v752
    %v760 = vxor.u32 %v758, 2147483648
    %v761 = vxor.u32 %v759, 2147483648
    %v762 = vmul.f32 %v760, 1.442695
    %v763 = vpow.pop %v762
    %v764 = vmul.f32 %v761, 1.442695
    %v765 = vpow.pop %v764
    %v766 = vadd.f32 %v763, 1.0
    %v767 = vadd.f32 %v765, 1.0
    %v768 = vrcp.pop %v766
    %v769 = vmul.f32 %v766, %v768
    %v770 = vsub.f32 1.0, %v769
    %v771 = vmul.f32 %v768, %v770
    %v772 = vadd.f32 %v768, %v771
    %vm773 = vweird.f32 %v766
    %vm774 = vweird.f32 %v768
    %vm775 = vmor %vm773, %vm774
    %v776 = vsel %vm775, %v768, %v772
    %v777 = vand.u32 2147483647, %v766
    %vm778 = vcmp.eq.f32.partialorder %v777, 8.507059e+37
    %v779 = vand.u32 %v766, 2147483648
    %v780 = vor.u32 1.1754944e-38, %v779
    %v781 = vsel %vm778, %v780, %v776
    %v782 = vmul.f32 1.0, %v781
    %v783 = vrcp.pop %v767
    %v784 = vmul.f32 %v767, %v783
    %v785 = vsub.f32 1.0, %v784
    %v786 = vmul.f32 %v783, %v785
    %v787 = vadd.f32 %v783, %v786
    %vm788 = vweird.f32 %v767
    %vm789 = vweird.f32 %v783
    %vm790 = vmor %vm788, %vm789
    %v791 = vsel %vm790, %v783, %v787
    %v792 = vand.u32 2147483647, %v767
    %vm793 = vcmp.eq.f32.partialorder %v792, 8.507059e+37
    %v794 = vand.u32 %v767, 2147483648
    %v795 = vor.u32 1.1754944e-38, %v794
    %v796 = vsel %vm793, %v795, %v791
    %v797 = vmul.f32 1.0, %v796
    %v798 = vtanh.pop %v758
    %v799 = vtanh.pop %v759
    %v802 = vrot.slane %v703, 7
    %v803 = vrot.slane %v704, 7
    %v806 = vmul.f32 %v782, %v802
    %v807 = vmul.f32 %v797, %v803
    %810 = vrot.lane.b32.xlu0 %v798, 64
    %v811 = vpop.permute.xlu0 %810
    %812 = vrot.lane.b32.xlu0 %v799, 64
    %v813 = vpop.permute.xlu0 %812
    %v816 = vmul.f32 %v782, %v811
    %v817 = vmul.f32 %v797, %v813
    %820 = vrot.lane.b32.xlu0 %v816, 32
    %v821 = vpop.permute.xlu0 %820
    %822 = vrot.lane.b32.xlu0 %v817, 32
    %v823 = vpop.permute.xlu0 %822
    %v826 = vadd.f32 %v806, %v821
    %v827 = vadd.f32 %v807, %v823
    %v828 = vtanh.pop %v826
    %v829 = vtanh.pop %v827
    %832 = vrot.lane.b32.xlu0 %v828, 64
    %v833 = vpop.permute.xlu0 %832
    %834 = vrot.lane.b32.xlu0 %v829, 64
    %v835 = vpop.permute.xlu0 %834
    %v838 = vmul.f32 %v782, %v833
    %v839 = vmul.f32 %v797, %v835
    %842 = vrot.lane.b32.xlu0 %v838, 32
    %v843 = vpop.permute.xlu0 %842
    %844 = vrot.lane.b32.xlu0 %v839, 32
    %v845 = vpop.permute.xlu0 %844
    %vm848 = vcmask 254977
    %849 = vst.msk [vmem:[#allocation2] sm:$0x2] %vm848, %v843
    %850 = vst.msk [vmem:[#allocation2 + $0x8] sm:$0x2] %vm848, %v845
    %v851 = vrot.slane %v838, 1
    %v852 = vsel %vm253, %v839, %v851
    %853 = vrot.lane.b32.xlu0 %v852, 32
    %v854 = vpop.permute.xlu0 %853
    %v855 = vsel %vm132, %v854, 0
    %857 = vmatpush.msra.mxu0 0.0
    %858 = vmatpush.msra.mxu0 0.0
    %859 = vmatpush.msra.mxu0 0.0
    %860 = vmatpush.msra.mxu0 0.0
    %861 = vmatpush.msra.mxu0 0.0
    %862 = vmatpush.msra.mxu0 0.0
    %863 = vmatpush.msra.mxu0 0.0
    %864 = vmatpush.msra.mxu0 0.0
    %865 = vmatpush.msra.mxu0 0.0
    %866 = vmatpush.msra.mxu0 0.0
    %867 = vmatpush.msra.mxu0 0.0
    %868 = vmatpush.msra.mxu0 0.0
    %869 = vmatpush.msra.mxu0 %v582
    %870 = vmatpush.msra.mxu0 %v581
    %871 = vmatpush.msra.mxu0 %v580
    %872 = vmatpush.msra.mxu0 %v579
    %873 = vmatmul.f32.gmra.mxu0 %v855
    %v874 = vpop.f32.mrf.mxu0
    %v875 = vadd.f32 0.0, %v874
    %876 = vdwg.mxu0
    %v878 = vrot.slane %v875, 6
    %v879 = vrot.slane %v875, 7
    %v882 = vadd.f32 %v609, %v878
    %v883 = vadd.f32 %v612, %v879
    %v884 = vxor.u32 %v882, 2147483648
    %v885 = vxor.u32 %v883, 2147483648
    %v886 = vmul.f32 %v884, 1.442695
    %v887 = vpow.pop %v886
    %v888 = vmul.f32 %v885, 1.442695
    %v889 = vpow.pop %v888
    %v890 = vadd.f32 %v887, 1.0
    %v891 = vadd.f32 %v889, 1.0
    %v892 = vrcp.pop %v890
    %v893 = vmul.f32 %v890, %v892
    %v894 = vsub.f32 1.0, %v893
    %v895 = vmul.f32 %v892, %v894
    %v896 = vadd.f32 %v892, %v895
    %vm897 = vweird.f32 %v890
    %vm898 = vweird.f32 %v892
    %vm899 = vmor %vm897, %vm898
    %v900 = vsel %vm899, %v892, %v896
    %v901 = vand.u32 2147483647, %v890
    %vm902 = vcmp.eq.f32.partialorder %v901, 8.507059e+37
    %v903 = vand.u32 %v890, 2147483648
    %v904 = vor.u32 1.1754944e-38, %v903
    %v905 = vsel %vm902, %v904, %v900
    %v906 = vmul.f32 1.0, %v905
    %v907 = vrcp.pop %v891
    %v908 = vmul.f32 %v891, %v907
    %v909 = vsub.f32 1.0, %v908
    %v910 = vmul.f32 %v907, %v909
    %v911 = vadd.f32 %v907, %v910
    %vm912 = vweird.f32 %v891
    %vm913 = vweird.f32 %v907
    %vm914 = vmor %vm912, %vm913
    %v915 = vsel %vm914, %v907, %v911
    %v916 = vand.u32 2147483647, %v891
    %vm917 = vcmp.eq.f32.partialorder %v916, 8.507059e+37
    %v918 = vand.u32 %v891, 2147483648
    %v919 = vor.u32 1.1754944e-38, %v918
    %v920 = vsel %vm917, %v919, %v915
    %v921 = vmul.f32 1.0, %v920
    %v922 = vtanh.pop %v882
    %v923 = vtanh.pop %v883
    %v926 = vrot.slane %v826, 7
    %v927 = vrot.slane %v827, 7
    %v930 = vmul.f32 %v906, %v926
    %v931 = vmul.f32 %v921, %v927
    %934 = vrot.lane.b32.xlu0 %v922, 64
    %v935 = vpop.permute.xlu0 %934
    %936 = vrot.lane.b32.xlu0 %v923, 64
    %v937 = vpop.permute.xlu0 %936
    %v940 = vmul.f32 %v906, %v935
    %v941 = vmul.f32 %v921, %v937
    %944 = vrot.lane.b32.xlu0 %v940, 32
    %v945 = vpop.permute.xlu0 %944
    %946 = vrot.lane.b32.xlu0 %v941, 32
    %v947 = vpop.permute.xlu0 %946
    %v950 = vadd.f32 %v930, %v945
    %v951 = vadd.f32 %v931, %v947
    %v952 = vtanh.pop %v950
    %v953 = vtanh.pop %v951
    %956 = vrot.lane.b32.xlu0 %v952, 64
    %v957 = vpop.permute.xlu0 %956
    %958 = vrot.lane.b32.xlu0 %v953, 64
    %v959 = vpop.permute.xlu0 %958
    %v962 = vmul.f32 %v906, %v957
    %v963 = vmul.f32 %v921, %v959
    %966 = vrot.lane.b32.xlu0 %v962, 32
    %v967 = vpop.permute.xlu0 %966
    %968 = vrot.lane.b32.xlu0 %v963, 32
    %v969 = vpop.permute.xlu0 %968
    %vm972 = vcmask 256002
    %973 = vst.msk [vmem:[#allocation2] sm:$0x4] %vm972, %v967
    %974 = vst.msk [vmem:[#allocation2 + $0x8] sm:$0x4] %vm972, %v969
    %v975 = vrot.slane %v962, 2
    %v976 = vrot.slane %v963, 1
    %v977 = vsel %vm253, %v976, %v975
    %978 = vrot.lane.b32.xlu0 %v977, 32
    %v979 = vpop.permute.xlu0 %978
    %v980 = vsel %vm132, %v979, 0
    %982 = vmatpush.msra.mxu0 0.0
    %983 = vmatpush.msra.mxu0 0.0
    %984 = vmatpush.msra.mxu0 0.0
    %985 = vmatpush.msra.mxu0 0.0
    %986 = vmatpush.msra.mxu0 0.0
    %987 = vmatpush.msra.mxu0 0.0
    %988 = vmatpush.msra.mxu0 0.0
    %989 = vmatpush.msra.mxu0 0.0
    %990 = vmatpush.msra.mxu0 0.0
    %991 = vmatpush.msra.mxu0 0.0
    %992 = vmatpush.msra.mxu0 0.0
    %993 = vmatpush.msra.mxu0 0.0
    %994 = vmatpush.msra.mxu0 %v582
    %995 = vmatpush.msra.mxu0 %v581
    %996 = vmatpush.msra.mxu0 %v580
    %997 = vmatpush.msra.mxu0 %v579
    %998 = vmatmul.f32.gmra.mxu0 %v980
    %v999 = vpop.f32.mrf.mxu0
    %v1000 = vadd.f32 0.0, %v999
    %1001 = vdwg.mxu0
    %v1003 = vrot.slane %v1000, 5
    %v1004 = vrot.slane %v1000, 6
    %v1007 = vadd.f32 %v609, %v1003
    %v1008 = vadd.f32 %v612, %v1004
    %v1009 = vxor.u32 %v1007, 2147483648
    %v1010 = vxor.u32 %v1008, 2147483648
    %v1011 = vmul.f32 %v1009, 1.442695
    %v1012 = vpow.pop %v1011
    %v1013 = vmul.f32 %v1010, 1.442695
    %v1014 = vpow.pop %v1013
    %v1015 = vadd.f32 %v1012, 1.0
    %v1016 = vadd.f32 %v1014, 1.0
    %v1017 = vrcp.pop %v1015
    %v1018 = vmul.f32 %v1015, %v1017
    %v1019 = vsub.f32 1.0, %v1018
    %v1020 = vmul.f32 %v1017, %v1019
    %v1021 = vadd.f32 %v1017, %v1020
    %vm1022 = vweird.f32 %v1015
    %vm1023 = vweird.f32 %v1017
    %vm1024 = vmor %vm1022, %vm1023
    %v1025 = vsel %vm1024, %v1017, %v1021
    %v1026 = vand.u32 2147483647, %v1015
    %vm1027 = vcmp.eq.f32.partialorder %v1026, 8.507059e+37
    %v1028 = vand.u32 %v1015, 2147483648
    %v1029 = vor.u32 1.1754944e-38, %v1028
    %v1030 = vsel %vm1027, %v1029, %v1025
    %v1031 = vmul.f32 1.0, %v1030
    %v1032 = vrcp.pop %v1016
    %v1033 = vmul.f32 %v1016, %v1032
    %v1034 = vsub.f32 1.0, %v1033
    %v1035 = vmul.f32 %v1032, %v1034
    %v1036 = vadd.f32 %v1032, %v1035
    %vm1037 = vweird.f32 %v1016
    %vm1038 = vweird.f32 %v1032
    %vm1039 = vmor %vm1037, %vm1038
    %v1040 = vsel %vm1039, %v1032, %v1036
    %v1041 = vand.u32 2147483647, %v1016
    %vm1042 = vcmp.eq.f32.partialorder %v1041, 8.507059e+37
    %v1043 = vand.u32 %v1016, 2147483648
    %v1044 = vor.u32 1.1754944e-38, %v1043
    %v1045 = vsel %vm1042, %v1044, %v1040
    %v1046 = vmul.f32 1.0, %v1045
    %v1047 = vtanh.pop %v1007
    %v1048 = vtanh.pop %v1008
    %v1051 = vrot.slane %v950, 7
    %v1052 = vrot.slane %v951, 7
    %v1055 = vmul.f32 %v1031, %v1051
    %v1056 = vmul.f32 %v1046, %v1052
    %1059 = vrot.lane.b32.xlu0 %v1047, 64
    %v1060 = vpop.permute.xlu0 %1059
    %1061 = vrot.lane.b32.xlu0 %v1048, 64
    %v1062 = vpop.permute.xlu0 %1061
    %v1065 = vmul.f32 %v1031, %v1060
    %v1066 = vmul.f32 %v1046, %v1062
    %1069 = vrot.lane.b32.xlu0 %v1065, 32
    %v1070 = vpop.permute.xlu0 %1069
    %1071 = vrot.lane.b32.xlu0 %v1066, 32
    %v1072 = vpop.permute.xlu0 %1071
    %v1075 = vadd.f32 %v1055, %v1070
    %v1076 = vadd.f32 %v1056, %v1072
    %v1077 = vtanh.pop %v1075
    %v1078 = vtanh.pop %v1076
    %1081 = vrot.lane.b32.xlu0 %v1077, 64
    %v1082 = vpop.permute.xlu0 %1081
    %1083 = vrot.lane.b32.xlu0 %v1078, 64
    %v1084 = vpop.permute.xlu0 %1083
    %v1087 = vmul.f32 %v1031, %v1082
    %v1088 = vmul.f32 %v1046, %v1084
    %1091 = vrot.lane.b32.xlu0 %v1087, 32
    %v1092 = vpop.permute.xlu0 %1091
    %1093 = vrot.lane.b32.xlu0 %v1088, 32
    %v1094 = vpop.permute.xlu0 %1093
    %vm1097 = vcmask 257027
    %1098 = vst.msk [vmem:[#allocation2] sm:$0x8] %vm1097, %v1092
    %1099 = vst.msk [vmem:[#allocation2 + $0x8] sm:$0x8] %vm1097, %v1094
    %v1100 = vrot.slane %v1087, 3
    %v1101 = vrot.slane %v1088, 2
    %v1102 = vsel %vm253, %v1101, %v1100
    %1103 = vrot.lane.b32.xlu0 %v1102, 32
    %v1104 = vpop.permute.xlu0 %1103
    %v1105 = vsel %vm132, %v1104, 0
    %1107 = vmatpush.msra.mxu0 0.0
    %1108 = vmatpush.msra.mxu0 0.0
    %1109 = vmatpush.msra.mxu0 0.0
    %1110 = vmatpush.msra.mxu0 0.0
    %1111 = vmatpush.msra.mxu0 0.0
    %1112 = vmatpush.msra.mxu0 0.0
    %1113 = vmatpush.msra.mxu0 0.0
    %1114 = vmatpush.msra.mxu0 0.0
    %1115 = vmatpush.msra.mxu0 0.0
    %1116 = vmatpush.msra.mxu0 0.0
    %1117 = vmatpush.msra.mxu0 0.0
    %1118 = vmatpush.msra.mxu0 0.0
    %1119 = vmatpush.msra.mxu0 %v582
    %1120 = vmatpush.msra.mxu0 %v581
    %1121 = vmatpush.msra.mxu0 %v580
    %1122 = vmatpush.msra.mxu0 %v579
    %1123 = vmatmul.f32.gmra.mxu0 %v1105
    %v1124 = vpop.f32.mrf.mxu0
    %v1125 = vadd.f32 0.0, %v1124
    %1126 = vdwg.mxu0
    %v1128 = vrot.slane %v1125, 4
    %v1129 = vrot.slane %v1125, 5
    %v1132 = vadd.f32 %v609, %v1128
    %v1133 = vadd.f32 %v612, %v1129
    %v1134 = vxor.u32 %v1132, 2147483648
    %v1135 = vxor.u32 %v1133, 2147483648
    %v1136 = vmul.f32 %v1134, 1.442695
    %v1137 = vpow.pop %v1136
    %v1138 = vmul.f32 %v1135, 1.442695
    %v1139 = vpow.pop %v1138
    %v1140 = vadd.f32 %v1137, 1.0
    %v1141 = vadd.f32 %v1139, 1.0
    %v1142 = vrcp.pop %v1140
    %v1143 = vmul.f32 %v1140, %v1142
    %v1144 = vsub.f32 1.0, %v1143
    %v1145 = vmul.f32 %v1142, %v1144
    %v1146 = vadd.f32 %v1142, %v1145
    %vm1147 = vweird.f32 %v1140
    %vm1148 = vweird.f32 %v1142
    %vm1149 = vmor %vm1147, %vm1148
    %v1150 = vsel %vm1149, %v1142, %v1146
    %v1151 = vand.u32 2147483647, %v1140
    %vm1152 = vcmp.eq.f32.partialorder %v1151, 8.507059e+37
    %v1153 = vand.u32 %v1140, 2147483648
    %v1154 = vor.u32 1.1754944e-38, %v1153
    %v1155 = vsel %vm1152, %v1154, %v1150
    %v1156 = vmul.f32 1.0, %v1155
    %v1157 = vrcp.pop %v1141
    %v1158 = vmul.f32 %v1141, %v1157
    %v1159 = vsub.f32 1.0, %v1158
    %v1160 = vmul.f32 %v1157, %v1159
    %v1161 = vadd.f32 %v1157, %v1160
    %vm1162 = vweird.f32 %v1141
    %vm1163 = vweird.f32 %v1157
    %vm1164 = vmor %vm1162, %vm1163
    %v1165 = vsel %vm1164, %v1157, %v1161
    %v1166 = vand.u32 2147483647, %v1141
    %vm1167 = vcmp.eq.f32.partialorder %v1166, 8.507059e+37
    %v1168 = vand.u32 %v1141, 2147483648
    %v1169 = vor.u32 1.1754944e-38, %v1168
    %v1170 = vsel %vm1167, %v1169, %v1165
    %v1171 = vmul.f32 1.0, %v1170
    %v1172 = vtanh.pop %v1132
    %v1173 = vtanh.pop %v1133
    %v1176 = vrot.slane %v1075, 7
    %v1177 = vrot.slane %v1076, 7
    %v1180 = vmul.f32 %v1156, %v1176
    %v1181 = vmul.f32 %v1171, %v1177
    %1184 = vrot.lane.b32.xlu0 %v1172, 64
    %v1185 = vpop.permute.xlu0 %1184
    %1186 = vrot.lane.b32.xlu0 %v1173, 64
    %v1187 = vpop.permute.xlu0 %1186
    %v1190 = vmul.f32 %v1156, %v1185
    %v1191 = vmul.f32 %v1171, %v1187
    %1194 = vrot.lane.b32.xlu0 %v1190, 32
    %v1195 = vpop.permute.xlu0 %1194
    %1196 = vrot.lane.b32.xlu0 %v1191, 32
    %v1197 = vpop.permute.xlu0 %1196
    %v1200 = vadd.f32 %v1180, %v1195
    %v1201 = vadd.f32 %v1181, %v1197
    %v1202 = vtanh.pop %v1200
    %v1203 = vtanh.pop %v1201
    %1206 = vrot.lane.b32.xlu0 %v1202, 64
    %v1207 = vpop.permute.xlu0 %1206
    %1208 = vrot.lane.b32.xlu0 %v1203, 64
    %v1209 = vpop.permute.xlu0 %1208
    %v1212 = vmul.f32 %v1156, %v1207
    %v1213 = vmul.f32 %v1171, %v1209
    %1216 = vrot.lane.b32.xlu0 %v1212, 32
    %v1217 = vpop.permute.xlu0 %1216
    %1218 = vrot.lane.b32.xlu0 %v1213, 32
    %v1219 = vpop.permute.xlu0 %1218
    %vm1222 = vcmask 258052
    %1223 = vst.msk [vmem:[#allocation2] sm:$0x10] %vm1222, %v1217
    %1224 = vst.msk [vmem:[#allocation2 + $0x8] sm:$0x10] %vm1222, %v1219
    %v1225 = vrot.slane %v1212, 4
    %v1226 = vrot.slane %v1213, 3
    %v1227 = vsel %vm253, %v1226, %v1225
    %1228 = vrot.lane.b32.xlu0 %v1227, 32
    %v1229 = vpop.permute.xlu0 %1228
    %v1230 = vsel %vm132, %v1229, 0
    %1232 = vmatpush.msra.mxu0 0.0
    %1233 = vmatpush.msra.mxu0 0.0
    %1234 = vmatpush.msra.mxu0 0.0
    %1235 = vmatpush.msra.mxu0 0.0
    %1236 = vmatpush.msra.mxu0 0.0
    %1237 = vmatpush.msra.mxu0 0.0
    %1238 = vmatpush.msra.mxu0 0.0
    %1239 = vmatpush.msra.mxu0 0.0
    %1240 = vmatpush.msra.mxu0 0.0
    %1241 = vmatpush.msra.mxu0 0.0
    %1242 = vmatpush.msra.mxu0 0.0
    %1243 = vmatpush.msra.mxu0 0.0
    %1244 = vmatpush.msra.mxu0 %v582
    %1245 = vmatpush.msra.mxu0 %v581
    %1246 = vmatpush.msra.mxu0 %v580
    %1247 = vmatpush.msra.mxu0 %v579
    %1248 = vmatmul.f32.gmra.mxu0 %v1230
    %v1249 = vpop.f32.mrf.mxu0
    %v1250 = vadd.f32 0.0, %v1249
    %1251 = vdwg.mxu0
    %v1253 = vrot.slane %v1250, 3
    %v1254 = vrot.slane %v1250, 4
    %v1257 = vadd.f32 %v609, %v1253
    %v1258 = vadd.f32 %v612, %v1254
    %v1259 = vxor.u32 %v1257, 2147483648
    %v1260 = vxor.u32 %v1258, 2147483648
    %v1261 = vmul.f32 %v1259, 1.442695
    %v1262 = vpow.pop %v1261
    %v1263 = vmul.f32 %v1260, 1.442695
    %v1264 = vpow.pop %v1263
    %v1265 = vadd.f32 %v1262, 1.0
    %v1266 = vadd.f32 %v1264, 1.0
    %v1267 = vrcp.pop %v1265
    %v1268 = vmul.f32 %v1265, %v1267
    %v1269 = vsub.f32 1.0, %v1268
    %v1270 = vmul.f32 %v1267, %v1269
    %v1271 = vadd.f32 %v1267, %v1270
    %vm1272 = vweird.f32 %v1265
    %vm1273 = vweird.f32 %v1267
    %vm1274 = vmor %vm1272, %vm1273
    %v1275 = vsel %vm1274, %v1267, %v1271
    %v1276 = vand.u32 2147483647, %v1265
    %vm1277 = vcmp.eq.f32.partialorder %v1276, 8.507059e+37
    %v1278 = vand.u32 %v1265, 2147483648
    %v1279 = vor.u32 1.1754944e-38, %v1278
    %v1280 = vsel %vm1277, %v1279, %v1275
    %v1281 = vmul.f32 1.0, %v1280
    %v1282 = vrcp.pop %v1266
    %v1283 = vmul.f32 %v1266, %v1282
    %v1284 = vsub.f32 1.0, %v1283
    %v1285 = vmul.f32 %v1282, %v1284
    %v1286 = vadd.f32 %v1282, %v1285
    %vm1287 = vweird.f32 %v1266
    %vm1288 = vweird.f32 %v1282
    %vm1289 = vmor %vm1287, %vm1288
    %v1290 = vsel %vm1289, %v1282, %v1286
    %v1291 = vand.u32 2147483647, %v1266
    %vm1292 = vcmp.eq.f32.partialorder %v1291, 8.507059e+37
    %v1293 = vand.u32 %v1266, 2147483648
    %v1294 = vor.u32 1.1754944e-38, %v1293
    %v1295 = vsel %vm1292, %v1294, %v1290
    %v1296 = vmul.f32 1.0, %v1295
    %v1297 = vtanh.pop %v1257
    %v1298 = vtanh.pop %v1258
    %v1301 = vrot.slane %v1200, 7
    %v1302 = vrot.slane %v1201, 7
    %v1305 = vmul.f32 %v1281, %v1301
    %v1306 = vmul.f32 %v1296, %v1302
    %1309 = vrot.lane.b32.xlu0 %v1297, 64
    %v1310 = vpop.permute.xlu0 %1309
    %1311 = vrot.lane.b32.xlu0 %v1298, 64
    %v1312 = vpop.permute.xlu0 %1311
    %v1315 = vmul.f32 %v1281, %v1310
    %v1316 = vmul.f32 %v1296, %v1312
    %1319 = vrot.lane.b32.xlu0 %v1315, 32
    %v1320 = vpop.permute.xlu0 %1319
    %1321 = vrot.lane.b32.xlu0 %v1316, 32
    %v1322 = vpop.permute.xlu0 %1321
    %v1325 = vadd.f32 %v1305, %v1320
    %v1326 = vadd.f32 %v1306, %v1322
    %v1327 = vtanh.pop %v1325
    %v1328 = vtanh.pop %v1326
    %1331 = vrot.lane.b32.xlu0 %v1327, 64
    %v1332 = vpop.permute.xlu0 %1331
    %1333 = vrot.lane.b32.xlu0 %v1328, 64
    %v1334 = vpop.permute.xlu0 %1333
    %v1337 = vmul.f32 %v1281, %v1332
    %v1338 = vmul.f32 %v1296, %v1334
    %1341 = vrot.lane.b32.xlu0 %v1337, 32
    %v1342 = vpop.permute.xlu0 %1341
    %1343 = vrot.lane.b32.xlu0 %v1338, 32
    %v1344 = vpop.permute.xlu0 %1343
    %vm1347 = vcmask 259077
    %1348 = vst.msk [vmem:[#allocation2] sm:$0x20] %vm1347, %v1342
    %1349 = vst.msk [vmem:[#allocation2 + $0x8] sm:$0x20] %vm1347, %v1344
    %v1350 = vrot.slane %v1337, 5
    %v1351 = vrot.slane %v1338, 4
    %v1352 = vsel %vm253, %v1351, %v1350
    %1353 = vrot.lane.b32.xlu0 %v1352, 32
    %v1354 = vpop.permute.xlu0 %1353
    %v1355 = vsel %vm132, %v1354, 0
    %1357 = vmatpush.msra.mxu0 0.0
    %1358 = vmatpush.msra.mxu0 0.0
    %1359 = vmatpush.msra.mxu0 0.0
    %1360 = vmatpush.msra.mxu0 0.0
    %1361 = vmatpush.msra.mxu0 0.0
    %1362 = vmatpush.msra.mxu0 0.0
    %1363 = vmatpush.msra.mxu0 0.0
    %1364 = vmatpush.msra.mxu0 0.0
    %1365 = vmatpush.msra.mxu0 0.0
    %1366 = vmatpush.msra.mxu0 0.0
    %1367 = vmatpush.msra.mxu0 0.0
    %1368 = vmatpush.msra.mxu0 0.0
    %1369 = vmatpush.msra.mxu0 %v582
    %1370 = vmatpush.msra.mxu0 %v581
    %1371 = vmatpush.msra.mxu0 %v580
    %1372 = vmatpush.msra.mxu0 %v579
    %1373 = vmatmul.f32.gmra.mxu0 %v1355
    %v1374 = vpop.f32.mrf.mxu0
    %v1375 = vadd.f32 0.0, %v1374
    %1376 = vdwg.mxu0
    %v1378 = vrot.slane %v1375, 2
    %v1379 = vrot.slane %v1375, 3
    %v1382 = vadd.f32 %v609, %v1378
    %v1383 = vadd.f32 %v612, %v1379
    %v1384 = vxor.u32 %v1382, 2147483648
    %v1385 = vxor.u32 %v1383, 2147483648
    %v1386 = vmul.f32 %v1384, 1.442695
    %v1387 = vpow.pop %v1386
    %v1388 = vmul.f32 %v1385, 1.442695
    %v1389 = vpow.pop %v1388
    %v1390 = vadd.f32 %v1387, 1.0
    %v1391 = vadd.f32 %v1389, 1.0
    %v1392 = vrcp.pop %v1390
    %v1393 = vmul.f32 %v1390, %v1392
    %v1394 = vsub.f32 1.0, %v1393
    %v1395 = vmul.f32 %v1392, %v1394
    %v1396 = vadd.f32 %v1392, %v1395
    %vm1397 = vweird.f32 %v1390
    %vm1398 = vweird.f32 %v1392
    %vm1399 = vmor %vm1397, %vm1398
    %v1400 = vsel %vm1399, %v1392, %v1396
    %v1401 = vand.u32 2147483647, %v1390
    %vm1402 = vcmp.eq.f32.partialorder %v1401, 8.507059e+37
    %v1403 = vand.u32 %v1390, 2147483648
    %v1404 = vor.u32 1.1754944e-38, %v1403
    %v1405 = vsel %vm1402, %v1404, %v1400
    %v1406 = vmul.f32 1.0, %v1405
    %v1407 = vrcp.pop %v1391
    %v1408 = vmul.f32 %v1391, %v1407
    %v1409 = vsub.f32 1.0, %v1408
    %v1410 = vmul.f32 %v1407, %v1409
    %v1411 = vadd.f32 %v1407, %v1410
    %vm1412 = vweird.f32 %v1391
    %vm1413 = vweird.f32 %v1407
    %vm1414 = vmor %vm1412, %vm1413
    %v1415 = vsel %vm1414, %v1407, %v1411
    %v1416 = vand.u32 2147483647, %v1391
    %vm1417 = vcmp.eq.f32.partialorder %v1416, 8.507059e+37
    %v1418 = vand.u32 %v1391, 2147483648
    %v1419 = vor.u32 1.1754944e-38, %v1418
    %v1420 = vsel %vm1417, %v1419, %v1415
    %v1421 = vmul.f32 1.0, %v1420
    %v1422 = vtanh.pop %v1382
    %v1423 = vtanh.pop %v1383
    %v1426 = vrot.slane %v1325, 7
    %v1427 = vrot.slane %v1326, 7
    %v1430 = vmul.f32 %v1406, %v1426
    %v1431 = vmul.f32 %v1421, %v1427
    %1434 = vrot.lane.b32.xlu0 %v1422, 64
    %v1435 = vpop.permute.xlu0 %1434
    %1436 = vrot.lane.b32.xlu0 %v1423, 64
    %v1437 = vpop.permute.xlu0 %1436
    %v1440 = vmul.f32 %v1406, %v1435
    %v1441 = vmul.f32 %v1421, %v1437
    %1444 = vrot.lane.b32.xlu0 %v1440, 32
    %v1445 = vpop.permute.xlu0 %1444
    %1446 = vrot.lane.b32.xlu0 %v1441, 32
    %v1447 = vpop.permute.xlu0 %1446
    %v1450 = vadd.f32 %v1430, %v1445
    %v1451 = vadd.f32 %v1431, %v1447
    %v1452 = vtanh.pop %v1450
    %v1453 = vtanh.pop %v1451
    %1456 = vrot.lane.b32.xlu0 %v1452, 64
    %v1457 = vpop.permute.xlu0 %1456
    %1458 = vrot.lane.b32.xlu0 %v1453, 64
    %v1459 = vpop.permute.xlu0 %1458
    %v1462 = vmul.f32 %v1406, %v1457
    %v1463 = vmul.f32 %v1421, %v1459
    %1466 = vrot.lane.b32.xlu0 %v1462, 32
    %v1467 = vpop.permute.xlu0 %1466
    %1468 = vrot.lane.b32.xlu0 %v1463, 32
    %v1469 = vpop.permute.xlu0 %1468
    %vm1472 = vcmask 260102
    %1473 = vst.msk [vmem:[#allocation2] sm:$0x40] %vm1472, %v1467
    %1474 = vst.msk [vmem:[#allocation2 + $0x8] sm:$0x40] %vm1472, %v1469
    %v1475 = vrot.slane %v1462, 6
    %v1476 = vrot.slane %v1463, 5
    %v1477 = vsel %vm253, %v1476, %v1475
    %1478 = vrot.lane.b32.xlu0 %v1477, 32
    %v1479 = vpop.permute.xlu0 %1478
    %v1480 = vsel %vm132, %v1479, 0
    %1482 = vmatpush.msra.mxu0 0.0
    %1483 = vmatpush.msra.mxu0 0.0
    %1484 = vmatpush.msra.mxu0 0.0
    %1485 = vmatpush.msra.mxu0 0.0
    %1486 = vmatpush.msra.mxu0 0.0
    %1487 = vmatpush.msra.mxu0 0.0
    %1488 = vmatpush.msra.mxu0 0.0
    %1489 = vmatpush.msra.mxu0 0.0
    %1490 = vmatpush.msra.mxu0 0.0
    %1491 = vmatpush.msra.mxu0 0.0
    %1492 = vmatpush.msra.mxu0 0.0
    %1493 = vmatpush.msra.mxu0 0.0
    %1494 = vmatpush.msra.mxu0 %v582
    %1495 = vmatpush.msra.mxu0 %v581
    %1496 = vmatpush.msra.mxu0 %v580
    %1497 = vmatpush.msra.mxu0 %v579
    %1498 = vmatmul.f32.gmra.mxu0 %v1480
    %v1499 = vpop.f32.mrf.mxu0
    %v1500 = vadd.f32 0.0, %v1499
    %1501 = vdwg.mxu0
    %v1503 = vrot.slane %v1500, 1
    %v1504 = vrot.slane %v1500, 2
    %v1507 = vadd.f32 %v609, %v1503
    %v1508 = vadd.f32 %v612, %v1504
    %v1509 = vxor.u32 %v1507, 2147483648
    %v1510 = vxor.u32 %v1508, 2147483648
    %v1511 = vmul.f32 %v1509, 1.442695
    %v1512 = vpow.pop %v1511
    %v1513 = vmul.f32 %v1510, 1.442695
    %v1514 = vpow.pop %v1513
    %v1515 = vadd.f32 %v1512, 1.0
    %v1516 = vadd.f32 %v1514, 1.0
    %v1517 = vrcp.pop %v1515
    %v1518 = vmul.f32 %v1515, %v1517
    %v1519 = vsub.f32 1.0, %v1518
    %v1520 = vmul.f32 %v1517, %v1519
    %v1521 = vadd.f32 %v1517, %v1520
    %vm1522 = vweird.f32 %v1515
    %vm1523 = vweird.f32 %v1517
    %vm1524 = vmor %vm1522, %vm1523
    %v1525 = vsel %vm1524, %v1517, %v1521
    %v1526 = vand.u32 2147483647, %v1515
    %vm1527 = vcmp.eq.f32.partialorder %v1526, 8.507059e+37
    %v1528 = vand.u32 %v1515, 2147483648
    %v1529 = vor.u32 1.1754944e-38, %v1528
    %v1530 = vsel %vm1527, %v1529, %v1525
    %v1531 = vmul.f32 1.0, %v1530
    %v1532 = vrcp.pop %v1516
    %v1533 = vmul.f32 %v1516, %v1532
    %v1534 = vsub.f32 1.0, %v1533
    %v1535 = vmul.f32 %v1532, %v1534
    %v1536 = vadd.f32 %v1532, %v1535
    %vm1537 = vweird.f32 %v1516
    %vm1538 = vweird.f32 %v1532
    %vm1539 = vmor %vm1537, %vm1538
    %v1540 = vsel %vm1539, %v1532, %v1536
    %v1541 = vand.u32 2147483647, %v1516
    %vm1542 = vcmp.eq.f32.partialorder %v1541, 8.507059e+37
    %v1543 = vand.u32 %v1516, 2147483648
    %v1544 = vor.u32 1.1754944e-38, %v1543
    %v1545 = vsel %vm1542, %v1544, %v1540
    %v1546 = vmul.f32 1.0, %v1545
    %v1547 = vtanh.pop %v1507
    %v1548 = vtanh.pop %v1508
    %v1551 = vrot.slane %v1450, 7
    %v1552 = vrot.slane %v1451, 7
    %v1555 = vmul.f32 %v1531, %v1551
    %v1556 = vmul.f32 %v1546, %v1552
    %1559 = vrot.lane.b32.xlu0 %v1547, 64
    %v1560 = vpop.permute.xlu0 %1559
    %1561 = vrot.lane.b32.xlu0 %v1548, 64
    %v1562 = vpop.permute.xlu0 %1561
    %v1565 = vmul.f32 %v1531, %v1560
    %v1566 = vmul.f32 %v1546, %v1562
    %1569 = vrot.lane.b32.xlu0 %v1565, 32
    %v1570 = vpop.permute.xlu0 %1569
    %1571 = vrot.lane.b32.xlu0 %v1566, 32
    %v1572 = vpop.permute.xlu0 %1571
    %v1575 = vadd.f32 %v1555, %v1570
    %v1576 = vadd.f32 %v1556, %v1572
    %v1577 = vtanh.pop %v1575
    %v1578 = vtanh.pop %v1576
    %1581 = vrot.lane.b32.xlu0 %v1577, 64
    %v1582 = vpop.permute.xlu0 %1581
    %1583 = vrot.lane.b32.xlu0 %v1578, 64
    %v1584 = vpop.permute.xlu0 %1583
    %v1587 = vmul.f32 %v1531, %v1582
    %v1588 = vmul.f32 %v1546, %v1584
    %1591 = vrot.lane.b32.xlu0 %v1587, 32
    %v1592 = vpop.permute.xlu0 %1591
    %1593 = vrot.lane.b32.xlu0 %v1588, 32
    %v1594 = vpop.permute.xlu0 %1593
    %vm1597 = vcmask 261127
    %1598 = vst.msk [vmem:[#allocation2] sm:$0x80] %vm1597, %v1592
    %1599 = vst.msk [vmem:[#allocation2 + $0x8] sm:$0x80] %vm1597, %v1594
    %v1600 = vld [vmem:[#allocation2] sm:$0xff]
    %v1601 = vld [vmem:[#allocation2 + $0x8] sm:$0xff]
    %v1602 = vld [vmem:[#allocation7 + $0x1c0] sm:$0xff]
    %v1603 = vld [vmem:[#allocation7 + $0x1c8] sm:$0xff]
    %v1604 = vld [vmem:[#allocation7 + $0x1d0] sm:$0xff]
    %v1605 = vld [vmem:[#allocation7 + $0x1d8] sm:$0xff]
    %v1606 = vld [vmem:[#allocation8 + $0xd] sm:$0x1]
    %v1607 = vperm.slane %v1606, 0
    %v1609 = vsel %vm132, %v1600, 0
    %v1612 = vsel %vm132, %v1601, 0
    %1614 = vmatpush.msra.mxu0 0.0
    %1615 = vmatpush.msra.mxu0 0.0
    %1616 = vmatpush.msra.mxu0 0.0
    %1617 = vmatpush.msra.mxu0 0.0
    %1618 = vmatpush.msra.mxu0 0.0
    %1619 = vmatpush.msra.mxu0 0.0
    %1620 = vmatpush.msra.mxu0 0.0
    %1621 = vmatpush.msra.mxu0 0.0
    %1622 = vmatpush.msra.mxu0 0.0
    %1623 = vmatpush.msra.mxu0 0.0
    %1624 = vmatpush.msra.mxu0 0.0
    %1625 = vmatpush.msra.mxu0 0.0
    %1626 = vmatpush.msra.mxu0 %v1605
    %1627 = vmatpush.msra.mxu0 %v1604
    %1628 = vmatpush.msra.mxu0 %v1603
    %1629 = vmatpush.msra.mxu0 %v1602
    %1630 = vmatmul.f32.gmra.mxu0 %v1609
    %v1631 = vpop.f32.mrf.mxu0
    %v1632 = vadd.f32 %v1607, %v1631
    %1633 = vmatmul.f32.gmra.mxu0 %v1612
    %v1634 = vpop.f32.mrf.mxu0
    %v1635 = vadd.f32 %v1607, %v1634
    %1636 = vdwg.mxu0
    %vm1637 = vcmp.ge.f32.partialorder %v1632, 0.0
    %vm1638 = vcmp.ge.f32.partialorder %v1635, 0.0
    %v1639 = vmul.f32 %v1632, 0.2
    %v1640 = vmul.f32 %v1635, 0.2
    %v1641 = vsel %vm1637, %v1632, %v1639
    %v1642 = vsel %vm1638, %v1635, %v1640
    %v1643 = vld [vmem:[#allocation7 + $0x1e0] sm:$0xff]
    %v1644 = vld [vmem:[#allocation7 + $0x1e8] sm:$0xff]
    %v1645 = vld [vmem:[#allocation7 + $0x1f0] sm:$0xff]
    %v1646 = vld [vmem:[#allocation7 + $0x1f8] sm:$0xff]
    %v1647 = vld [vmem:[#allocation8 + $0xe] sm:$0x1]
    %v1648 = vperm.slane %v1647, 0
    %v1650 = vsel %vm132, %v1641, 0
    %v1653 = vsel %vm132, %v1642, 0
    %1655 = vmatpush.msra.mxu0 0.0
    %1656 = vmatpush.msra.mxu0 0.0
    %1657 = vmatpush.msra.mxu0 0.0
    %1658 = vmatpush.msra.mxu0 0.0
    %1659 = vmatpush.msra.mxu0 0.0
    %1660 = vmatpush.msra.mxu0 0.0
    %1661 = vmatpush.msra.mxu0 0.0
    %1662 = vmatpush.msra.mxu0 0.0
    %1663 = vmatpush.msra.mxu0 0.0
    %1664 = vmatpush.msra.mxu0 0.0
    %1665 = vmatpush.msra.mxu0 0.0
    %1666 = vmatpush.msra.mxu0 0.0
    %1667 = vmatpush.msra.mxu0 %v1646
    %1668 = vmatpush.msra.mxu0 %v1645
    %1669 = vmatpush.msra.mxu0 %v1644
    %1670 = vmatpush.msra.mxu0 %v1643
    %1671 = vmatmul.f32.gmra.mxu0 %v1650
    %v1672 = vpop.f32.mrf.mxu0
    %v1673 = vadd.f32 %v1648, %v1672
    %1674 = vmatmul.f32.gmra.mxu0 %v1653
    %v1675 = vpop.f32.mrf.mxu0
    %v1676 = vadd.f32 %v1648, %v1675
    %1677 = vdwg.mxu0
    %vm1678 = vcmp.ge.f32.partialorder %v1673, 0.0
    %vm1679 = vcmp.ge.f32.partialorder %v1676, 0.0
    %v1680 = vmul.f32 %v1673, 0.2
    %v1681 = vmul.f32 %v1676, 0.2
    %v1682 = vsel %vm1678, %v1673, %v1680
    %v1683 = vsel %vm1679, %v1676, %v1681
    %v1684 = vld [vmem:[#allocation7 + $0x200] sm:$0xff]
    %v1685 = vld [vmem:[#allocation7 + $0x208] sm:$0xff]
    %v1686 = vld [vmem:[#allocation7 + $0x210] sm:$0xff]
    %v1687 = vld [vmem:[#allocation7 + $0x218] sm:$0xff]
    %v1688 = vld [vmem:[#allocation8 + $0xf] sm:$0x1]
    %v1689 = vperm.slane %v1688, 0
    %v1691 = vsel %vm132, %v1682, 0
    %v1694 = vsel %vm132, %v1683, 0
    %1696 = vmatpush.msra.mxu0 0.0
    %1697 = vmatpush.msra.mxu0 0.0
    %1698 = vmatpush.msra.mxu0 0.0
    %1699 = vmatpush.msra.mxu0 0.0
    %1700 = vmatpush.msra.mxu0 0.0
    %1701 = vmatpush.msra.mxu0 0.0
    %1702 = vmatpush.msra.mxu0 0.0
    %1703 = vmatpush.msra.mxu0 0.0
    %1704 = vmatpush.msra.mxu0 0.0
    %1705 = vmatpush.msra.mxu0 0.0
    %1706 = vmatpush.msra.mxu0 0.0
    %1707 = vmatpush.msra.mxu0 0.0
    %1708 = vmatpush.msra.mxu0 %v1687
    %1709 = vmatpush.msra.mxu0 %v1686
    %1710 = vmatpush.msra.mxu0 %v1685
    %1711 = vmatpush.msra.mxu0 %v1684
    %1712 = vmatmul.f32.gmra.mxu0 %v1691
    %v1713 = vpop.f32.mrf.mxu0
    %v1714 = vadd.f32 %v1689, %v1713
    %1715 = vmatmul.f32.gmra.mxu0 %v1694
    %v1716 = vpop.f32.mrf.mxu0
    %v1717 = vadd.f32 %v1689, %v1716
    %1718 = vdwg.mxu0
    %vm1719 = vcmp.ge.f32.partialorder %v1714, 0.0
    %vm1720 = vcmp.ge.f32.partialorder %v1717, 0.0
    %v1721 = vmul.f32 %v1714, 0.2
    %v1722 = vmul.f32 %v1717, 0.2
    %v1723 = vsel %vm1719, %v1714, %v1721
    %v1724 = vsel %vm1720, %v1717, %v1722
    %v1725 = vld [vmem:[#allocation7 + $0x220] sm:$0xff]
    %v1726 = vld [vmem:[#allocation7 + $0x228] sm:$0xff]
    %v1727 = vld [vmem:[#allocation7 + $0x230] sm:$0xff]
    %v1728 = vld [vmem:[#allocation7 + $0x238] sm:$0xff]
    %v1729 = vld [vmem:[#allocation8 + $0x10] sm:$0x1]
    %v1730 = vperm.slane %v1729, 0
    %v1732 = vsel %vm132, %v1723, 0
    %v1735 = vsel %vm132, %v1724, 0
    %1737 = vmatpush.msra.mxu0 0.0
    %1738 = vmatpush.msra.mxu0 0.0
    %1739 = vmatpush.msra.mxu0 0.0
    %1740 = vmatpush.msra.mxu0 0.0
    %1741 = vmatpush.msra.mxu0 0.0
    %1742 = vmatpush.msra.mxu0 0.0
    %1743 = vmatpush.msra.mxu0 0.0
    %1744 = vmatpush.msra.mxu0 0.0
    %1745 = vmatpush.msra.mxu0 0.0
    %1746 = vmatpush.msra.mxu0 0.0
    %1747 = vmatpush.msra.mxu0 0.0
    %1748 = vmatpush.msra.mxu0 0.0
    %1749 = vmatpush.msra.mxu0 %v1728
    %1750 = vmatpush.msra.mxu0 %v1727
    %1751 = vmatpush.msra.mxu0 %v1726
    %1752 = vmatpush.msra.mxu0 %v1725
    %1753 = vmatmul.f32.gmra.mxu0 %v1732
    %v1754 = vpop.f32.mrf.mxu0
    %v1755 = vadd.f32 %v1730, %v1754
    %1756 = vmatmul.f32.gmra.mxu0 %v1735
    %v1757 = vpop.f32.mrf.mxu0
    %v1758 = vadd.f32 %v1730, %v1757
    %1759 = vdwg.mxu0
    %vm1760 = vcmask 56320
    %1761 = vst.msk [vmem:[%s4] sm:$0xff] %vm1760, %v1755
    %1762 = vst.msk [vmem:[%s4 + $0x8] sm:$0xff] %vm1760, %v1758
    // Predicated region
    $region34: #{forward.1} parent=1 // pred_check
      _
    $region35: #{forward.1} parent=1 // pred_check_branch
      %1764 = sbr.rel (0) target = $region37
    $region36: #{forward.1} parent=1 // pred_region
      _
    $region37: #{forward.1} parent=1 // pred_fallthru
      _
    // Predicated region
    $region38: #{forward.1} parent=1 // pred_check
      _
    $region39: #{forward.1} parent=1 // pred_check_branch
      %1766 = sbr.rel (0) target = $region41
    $region40: #{forward.1} parent=1 // pred_region
      _
    $region41: #{forward.1} parent=1 // pred_fallthru
      _
    %1767 = vsyncpa [#allocation4], 1
    %1768 = vsyncpa [#allocation6], 1
    %1769 = vsyncpa [#allocation9], 1

</llo_original>
